<compile_context>
chip_gen: v7x
topology: tpu7x:2x2x1
jax: 0.10.0
libtpu: 0.0.40
codegen_flags: <defaults>
</compile_context>

<pallas_src>
import jax
import jax.numpy as jnp
from jax.experimental import pallas as pl
from jax.experimental.pallas import tpu as pltpu

# ---------------- small synthetic Qwen2-style config ----------------
B, S, D = 2, 8, 32          # batch, seq, hidden
H, KVH, HD = 4, 2, 8        # attn heads, kv heads (GQA), head_dim (D == H*HD)
REP = H // KVH              # query heads per kv head
I = 64                      # MLP intermediate size
V = 64                      # vocab size for lm_head
V_PAD = 128                 # lane-dense padded vocab for the kernel output
N_LAYERS = 2
NT = B * S                  # flattened token count
EPS = 1e-6
ROPE_THETA = 10000.0
NEG_INF = -1e9

QO = H * HD                 # 32  query columns inside the fused qkv output
KO = KVH * HD               # 16  key (and value) columns
QKVO = QO + 2 * KO          # 64  fused qkv width
ROPE_W = QO + KO            # 48  columns that receive RoPE (q + k)
GU = 2 * I                  # 128 fused gate+up width (one full vreg row of lanes)
NG = B * KVH                # 4   attention groups = (batch, kv head)
GM = REP * S                # 16  query rows per attention group


# ---------------- in-kernel helpers ----------------
def _rms_norm(x, w):
    # f32 statistics (matches Qwen2RMSNorm); w broadcasts over rows
    var = jnp.mean(x * x, axis=-1, keepdims=True)
    return (x * jax.lax.rsqrt(var + EPS)) * w


def _rotate_half_heads(t, n_heads):
    """Per-HD-chunk half rotation of a (rows, n_heads*HD) tensor.

    No negation here: the rotate_half sign is baked into the sin table, so this
    is pure static-slice data movement.  (At real head_dim use pltpu.roll.)
    """
    half = HD // 2
    parts = []
    for h in range(n_heads):
        base = h * HD
        parts.append(t[:, base + half:base + HD])
        parts.append(t[:, base:base + half])
    return jnp.concatenate(parts, axis=-1)


# ---------------- fused Pallas kernel ----------------
def last_stage_kernel(x_ref, mask_ref, cos_ref, sin_ref,
                      wqkv_ref, bqkv_ref, wo_ref, ln1_ref, ln2_ref,
                      wgu_ref, wd_ref, nw_ref, wlm_ref,
                      out_ref,
                      h_ref, qg_ref, kg_ref, vg_ref, of_ref):
    layer = pl.program_id(0)
    bf16 = jnp.bfloat16

    # Load the stage input into the resident VMEM hidden state once.
    @pl.when(layer == 0)
    def _init():
        h_ref[...] = x_ref[...]

    x = h_ref[...]                                   # (NT, D) f32 residual stream

    # ---------------- self-attention ----------------
    hn = _rms_norm(x, ln1_ref[0]).astype(bf16)       # (NT, D) bf16

    # Fused QKV projection: one lane-dense matmul (1/sqrt(HD) folded into wq/bq).
    qkv = jnp.dot(hn, wqkv_ref[0],
                  preferred_element_type=jnp.float32) + bqkv_ref[0]   # (NT, QKVO)

    # RoPE on q and k together: sign-baked sin table, one 48-lane-wide mul-add.
    qk = qkv[:, :ROPE_W]
    qk = qk * cos_ref[...] + _rotate_half_heads(qk, H + KVH) * sin_ref[...]
    v_all = qkv[:, ROPE_W:]                          # (NT, KO), no rope on V

    # Regroup into (batch, kv-head) attention groups via VMEM scratch staging:
    # query rows are ordered (rep, seq) within a group; K/V are NOT duplicated.
    for b in range(B):
        for g in range(KVH):
            gi = b * KVH + g
            for r in range(REP):
                h_idx = g * REP + r
                qg_ref[gi, r * S:(r + 1) * S, :] = \
                    qk[b * S:(b + 1) * S, h_idx * HD:(h_idx + 1) * HD]
            kg_ref[gi, :, :] = qk[b * S:(b + 1) * S, QO + g * HD:QO + (g + 1) * HD]
            vg_ref[gi, :, :] = v_all[b * S:(b + 1) * S, g * HD:(g + 1) * HD]

    qg = qg_ref[...].astype(bf16)                    # (NG, GM, HD)
    kg = kg_ref[...].astype(bf16)                    # (NG, S, HD)
    vg = vg_ref[...].astype(bf16)                    # (NG, S, HD)

    s = jnp.einsum("gme,gke->gmk", qg, kg,
                   preferred_element_type=jnp.float32)      # (NG, GM, S)
    s = s + mask_ref[...]                                    # additive mask per group
    s = s - jnp.max(s, axis=-1, keepdims=True)
    p = jnp.exp(s)                                           # f32 (v5e-safe)
    p = p * pl.reciprocal(jnp.sum(p, axis=-1, keepdims=True), approx=True)

    o = jnp.einsum("gmk,gke->gme", p.astype(bf16), vg,
                   preferred_element_type=jnp.float32)       # (NG, GM, HD)

    # Back to token-major (NT, H*HD) so the output projection is ONE matmul with
    # the head reduction folded into the MXU contraction.
    for b in range(B):
        for g in range(KVH):
            gi = b * KVH + g
            for r in range(REP):
                h_idx = g * REP + r
                of_ref[b * S:(b + 1) * S, h_idx * HD:(h_idx + 1) * HD] = \
                    o[gi, r * S:(r + 1) * S, :]

    x = x + jnp.dot(of_ref[...].astype(bf16), wo_ref[0],
                    preferred_element_type=jnp.float32)      # (NT, D)

    # ---------------- MLP (SwiGLU), gate+up fused ----------------
    hn2 = _rms_norm(x, ln2_ref[0]).astype(bf16)
    gu = jnp.dot(hn2, wgu_ref[0], preferred_element_type=jnp.float32)   # (NT, 2I)
    gact = gu[:, :I]
    up = gu[:, I:]
    m = (gact * jax.nn.sigmoid(gact)) * up                   # SiLU(gate)*up in f32
    x = x + jnp.dot(m.astype(bf16), wd_ref[0], preferred_element_type=jnp.float32)

    h_ref[...] = x                                           # stays resident in VMEM

    # -------------- final RMSNorm + lm_head (last layer only) --------------
    @pl.when(layer == pl.num_programs(0) - 1)
    def _final():
        hf = _rms_norm(x, nw_ref[...]).astype(bf16)
        out_ref[...] = jnp.dot(hf, wlm_ref[...],
                               preferred_element_type=jnp.float32
                               ).astype(out_ref.dtype)       # (NT, V_PAD), lane-dense


# ---------------- wrapper (pallas_call plumbing + cheap JAX glue) ----------------
def _const_spec(shape):
    n = len(shape)
    return pl.BlockSpec(tuple(shape), lambda l, _n=n: (0,) * _n)


def _layer_spec(shape):
    n = len(shape)
    return pl.BlockSpec((1,) + tuple(shape[1:]),
                        lambda l, _n=n: (l,) + (0,) * (_n - 1))


def rotary_embedding(position_ids):
    """Qwen2 rotary table: cos, sin of shape (B, S, HD)."""
    inv_freq = 1.0 / (ROPE_THETA ** (jnp.arange(0, HD, 2, dtype=jnp.float32) / HD))
    freqs = position_ids.astype(jnp.float32)[:, :, None] * inv_freq[None, None, :]
    emb = jnp.concatenate([freqs, freqs], axis=-1)           # (B, S, HD)
    return jnp.cos(emb), jnp.sin(emb)


@jax.jit
def last_stage_forward(params, hidden_states, decoder_attn_mask, position_ids):
    # Cheap JAX glue: rotary tables (sign-baked, tiled across q+k head chunks),
    # per-group attention mask, token flattening.
    cos, sin = rotary_embedding(position_ids)                # (B, S, HD)
    sign = jnp.concatenate([-jnp.ones((HD // 2,), jnp.float32),
                            jnp.ones((HD // 2,), jnp.float32)])
    cos_qk = jnp.tile(cos.reshape(NT, HD), (1, H + KVH))           # (NT, 48)
    sin_qk = jnp.tile((sin * sign).reshape(NT, HD), (1, H + KVH))  # (NT, 48)

    mask_bss = decoder_attn_mask[:, 0].astype(jnp.float32)   # (B, S, S) additive
    mask_g = jnp.broadcast_to(mask_bss[:, None, None, :, :],
                              (B, KVH, REP, S, S)).reshape(NG, GM, S)

    x = hidden_states.reshape(NT, D).astype(jnp.float32)

    p = params
    in_specs = [
        _const_spec((NT, D)),            # hidden (read only on layer 0)
        _const_spec((NG, GM, S)),        # grouped additive mask
        _const_spec((NT, ROPE_W)),       # cos (tiled over q+k head chunks)
        _const_spec((NT, ROPE_W)),       # sin (sign baked in)
        _layer_spec(p["wqkv"].shape), _layer_spec(p["bqkv"].shape),
        _layer_spec(p["wo"].shape),
        _layer_spec(p["ln1"].shape), _layer_spec(p["ln2"].shape),
        _layer_spec(p["wgu"].shape), _layer_spec(p["wd"].shape),
        _const_spec(p["final_norm"].shape),
        _const_spec(p["lm_head"].shape),
    ]

    logits_padded = pl.pallas_call(
        last_stage_kernel,
        out_shape=jax.ShapeDtypeStruct((NT, V_PAD), jnp.bfloat16),  # bf16 writeback
        grid=(N_LAYERS,),
        in_specs=in_specs,
        out_specs=_const_spec((NT, V_PAD)),
        scratch_shapes=[
            pltpu.VMEM((NT, D), jnp.float32),        # resident hidden state
            pltpu.VMEM((NG, GM, HD), jnp.float32),   # grouped q
            pltpu.VMEM((NG, S, HD), jnp.float32),    # grouped k
            pltpu.VMEM((NG, S, HD), jnp.float32),    # grouped v
            pltpu.VMEM((NT, H * HD), jnp.float32),   # token-major attention output
        ],
        compiler_params=pltpu.CompilerParams(
            dimension_semantics=("arbitrary",),      # layer axis is sequential
        ),
    )(x, mask_g, cos_qk, sin_qk,
      p["wqkv"], p["bqkv"], p["wo"], p["ln1"], p["ln2"], p["wgu"], p["wd"],
      p["final_norm"], p["lm_head"])

    return logits_padded.reshape(B, S, V_PAD)[:, :, :V].astype(jnp.float32)


# ---------------- pure-JAX reference (for correctness check) ----------------
def last_stage_reference(params, hidden_states, decoder_attn_mask, position_ids):
    f32 = jnp.float32
    cos, sin = rotary_embedding(position_ids)                # (B, S, HD)
    x = hidden_states.astype(f32)                            # (B, S, D)
    mask = decoder_attn_mask[:, 0].astype(f32)               # (B, S, S)

    def rope(t):                                             # t: (B, S, nh, HD)
        half = HD // 2
        rot = jnp.concatenate([-t[..., half:], t[..., :half]], axis=-1)
        return t * cos[:, :, None, :] + rot * sin[:, :, None, :]

    for l in range(N_LAYERS):
        hn = _rms_norm(x, params["ln1"][l])
        qkv = jnp.einsum("bsd,dk->bsk", hn,
                         params["wqkv"][l].astype(f32)) + params["bqkv"][l, 0]
        q = qkv[..., :QO].reshape(B, S, H, HD)
        k = qkv[..., QO:QO + KO].reshape(B, S, KVH, HD)
        v = qkv[..., QO + KO:].reshape(B, S, KVH, HD)
        q = rope(q)                 # NOTE: 1/sqrt(HD) already folded into wq/bq
        k = rope(k)
        k = jnp.repeat(k, REP, axis=2)
        v = jnp.repeat(v, REP, axis=2)
        s = jnp.einsum("bqhd,bkhd->bhqk", q, k) + mask[:, None]
        p = jax.nn.softmax(s, axis=-1)
        o = jnp.einsum("bhqk,bkhd->bqhd", p, v).reshape(B, S, H * HD)
        x = x + jnp.einsum("bsk,kd->bsd", o, params["wo"][l].astype(f32))
        hn2 = _rms_norm(x, params["ln2"][l])
        gu = jnp.einsum("bsd,dk->bsk", hn2, params["wgu"][l].astype(f32))
        g, u = gu[..., :I], gu[..., I:]
        x = x + jnp.einsum("bsk,kd->bsd", (g * jax.nn.sigmoid(g)) * u,
                           params["wd"][l].astype(f32))
    hf = _rms_norm(x, params["final_norm"])
    return jnp.einsum("bsd,dv->bsv", hf, params["lm_head"].astype(f32)[:, :V])


# ---------------- deterministic parameter init ----------------
def init_params(key):
    L = N_LAYERS
    bf16 = jnp.bfloat16
    q_scale = 1.0 / (HD ** 0.5)      # attention scale folded into wq / bq (free)

    def nrm(k, shape, scale=0.02):
        return scale * jax.random.normal(k, shape, jnp.float32)

    ks = jax.random.split(key, 11)
    wq = nrm(ks[0], (L, D, H * HD)) * q_scale
    bq = nrm(ks[1], (L, H * HD)) * q_scale
    wk = nrm(ks[2], (L, D, KVH * HD)); bk = nrm(ks[3], (L, KVH * HD))
    wv = nrm(ks[4], (L, D, KVH * HD)); bv = nrm(ks[5], (L, KVH * HD))
    wo = nrm(ks[6], (L, H * HD, D))
    wg = nrm(ks[7], (L, D, I))
    wu = nrm(ks[8], (L, D, I))
    wd = nrm(ks[9], (L, I, D))
    lm = nrm(ks[10], (D, V))

    return dict(
        # fused, lane-dense layouts
        wqkv=jnp.concatenate([wq, wk, wv], axis=-1).astype(bf16),   # (L, D, 64)
        bqkv=jnp.concatenate([bq, bk, bv], axis=-1)[:, None, :],    # (L, 1, 64) f32
        wo=wo.astype(bf16),                                         # (L, H*HD, D)
        ln1=jnp.ones((L, 1, D), jnp.float32),
        ln2=jnp.ones((L, 1, D), jnp.float32),
        wgu=jnp.concatenate([wg, wu], axis=-1).astype(bf16),        # (L, D, 128)
        wd=wd.astype(bf16),                                         # (L, I, D)
        final_norm=jnp.ones((1, D), jnp.float32),
        # lm_head padded to a lane-dense 128-wide output; padded columns are zero
        lm_head=jnp.pad(lm, ((0, 0), (0, V_PAD - V))).astype(bf16),
    )


if __name__ == "__main__":
    key = jax.random.PRNGKey(0)
    k_h, k_p = jax.random.split(key)

    hidden_states = jax.random.normal(k_h, (B, S, D), jnp.float32)
    position_ids = jnp.broadcast_to(jnp.arange(S, dtype=jnp.int32), (B, S))

    # causal additive mask, PyTorch-style (B, 1, S, S): 0 keep, -1e9 masked
    causal = jnp.tril(jnp.ones((S, S), jnp.bool_))
    decoder_attn_mask = jnp.where(causal, 0.0, NEG_INF).astype(jnp.float32)
    decoder_attn_mask = jnp.broadcast_to(decoder_attn_mask, (B, 1, S, S))

    params = init_params(k_p)

    logits = last_stage_forward(params, hidden_states, decoder_attn_mask, position_ids)
    jax.block_until_ready(logits)

    assert logits.shape == (B, S, V), logits.shape
    assert bool(jnp.all(jnp.isfinite(logits)))

    # parity with the pure-JAX reference (tolerance covers bf16 activations,
    # bf16 logits writeback and the EUP approx reciprocal in the softmax)
    ref = last_stage_reference(params, hidden_states, decoder_attn_mask, position_ids)
    max_err = float(jnp.max(jnp.abs(logits - ref)))
    assert max_err < 2e-2, f"max abs error vs reference: {max_err}"

    print("KERNEL_OK")
</pallas_src>

<mosaic_0001>
module attributes {stable_mosaic.version = 11 : i64} {
  func.func @last_stage_kernel(%arg0: i32, %arg1: memref<16x32xf32, #tpu.memory_space<vmem>>, %arg2: memref<4x16x8xf32, #tpu.memory_space<vmem>>, %arg3: memref<16x48xf32, #tpu.memory_space<vmem>>, %arg4: memref<16x48xf32, #tpu.memory_space<vmem>>, %arg5: memref<1x32x64xbf16, #tpu.memory_space<vmem>>, %arg6: memref<1x1x64xf32, #tpu.memory_space<vmem>>, %arg7: memref<1x32x32xbf16, #tpu.memory_space<vmem>>, %arg8: memref<1x1x32xf32, #tpu.memory_space<vmem>>, %arg9: memref<1x1x32xf32, #tpu.memory_space<vmem>>, %arg10: memref<1x32x128xbf16, #tpu.memory_space<vmem>>, %arg11: memref<1x64x32xbf16, #tpu.memory_space<vmem>>, %arg12: memref<1x32xf32, #tpu.memory_space<vmem>>, %arg13: memref<32x128xbf16, #tpu.memory_space<vmem>>, %arg14: memref<16x128xbf16, #tpu.memory_space<vmem>>, %arg15: memref<16x32xf32, #tpu.memory_space<vmem>>, %arg16: memref<4x16x8xf32, #tpu.memory_space<vmem>>, %arg17: memref<4x8x8xf32, #tpu.memory_space<vmem>>, %arg18: memref<4x8x8xf32, #tpu.memory_space<vmem>>, %arg19: memref<16x32xf32, #tpu.memory_space<vmem>>) attributes {dimension_semantics = [#tpu.dimension_semantics<arbitrary>], iteration_bounds = array<i64: 2>, scalar_prefetch = 0 : i64, scratch_operands = 5 : i64, tpu.core_type = #tpu.core_type<tc>, window_params = [{pipeline_mode = #tpu.pipeline_mode<synchronous>, transform_indices = @transform_0, window_bounds = array<i64: 16, 32>}, {pipeline_mode = #tpu.pipeline_mode<synchronous>, transform_indices = @transform_1, window_bounds = array<i64: 4, 16, 8>}, {pipeline_mode = #tpu.pipeline_mode<synchronous>, transform_indices = @transform_2, window_bounds = array<i64: 16, 48>}, {pipeline_mode = #tpu.pipeline_mode<synchronous>, transform_indices = @transform_3, window_bounds = array<i64: 16, 48>}, {transform_indices = @transform_4, window_bounds = array<i64: 1, 32, 64>}, {transform_indices = @transform_5, window_bounds = array<i64: 1, 1, 64>}, {transform_indices = @transform_6, window_bounds = array<i64: 1, 32, 32>}, {transform_indices = @transform_7, window_bounds = array<i64: 1, 1, 32>}, {transform_indices = @transform_8, window_bounds = array<i64: 1, 1, 32>}, {transform_indices = @transform_9, window_bounds = array<i64: 1, 32, 128>}, {transform_indices = @transform_10, window_bounds = array<i64: 1, 64, 32>}, {pipeline_mode = #tpu.pipeline_mode<synchronous>, transform_indices = @transform_11, window_bounds = array<i64: 1, 32>}, {pipeline_mode = #tpu.pipeline_mode<synchronous>, transform_indices = @transform_12, window_bounds = array<i64: 32, 128>}, {pipeline_mode = #tpu.pipeline_mode<synchronous>, transform_indices = @transform_13, window_bounds = array<i64: 16, 128>}]} {
    %c0_i32 = arith.constant 0 : i32
    %0 = arith.cmpi eq, %arg0, %c0_i32 : i32
    %1 = arith.extui %0 : i1 to i32
    %c0_i32_0 = arith.constant 0 : i32
    %2 = arith.cmpi ne, %1, %c0_i32_0 : i32
    scf.if %2 {
      %c0_116 = arith.constant 0 : index
      %c0_117 = arith.constant 0 : index
      %197 = vector.load %arg1[%c0_116, %c0_117] : memref<16x32xf32, #tpu.memory_space<vmem>>, vector<16x32xf32>
      %c0_118 = arith.constant 0 : index
      %c0_119 = arith.constant 0 : index
      %198 = vector.load %arg15[%c0_118, %c0_119] : memref<16x32xf32, #tpu.memory_space<vmem>>, vector<16x32xf32>
      tpu.vector_store %arg15[%c0_118, %c0_119], %197 {strides = array<i32>} : memref<16x32xf32, #tpu.memory_space<vmem>>, vector<16x32xf32>,
    } else {
    }
    %c0 = arith.constant 0 : index
    %c0_1 = arith.constant 0 : index
    %3 = vector.load %arg15[%c0, %c0_1] : memref<16x32xf32, #tpu.memory_space<vmem>>, vector<16x32xf32>
    %c0_2 = arith.constant 0 : index
    %c0_3 = arith.constant 0 : index
    %c0_4 = arith.constant 0 : index
    %4 = vector.load %arg8[%c0_2, %c0_3, %c0_4] : memref<1x1x32xf32, #tpu.memory_space<vmem>>, vector<1x1x32xf32>
    %5 = vector.shape_cast %4 : vector<1x1x32xf32> to vector<1x32xf32>
    %6 = arith.mulf %3, %3 : vector<16x32xf32>
    %cst = arith.constant dense<0.000000e+00> : vector<16xf32>
    %7 = vector.multi_reduction <add>, %6, %cst [1] : vector<16x32xf32> to vector<16xf32>
    %8 = vector.shape_cast %7 : vector<16xf32> to vector<16x1xf32>
    %cst_5 = arith.constant 3.200000e+01 : f32
    %9 = vector.broadcast %cst_5 : f32 to vector<16x1xf32>
    %10 = arith.divf %8, %9 : vector<16x1xf32>
    %cst_6 = arith.constant 9.99999997E-7 : f32
    %11 = vector.broadcast %cst_6 : f32 to vector<16x1xf32>
    %12 = arith.addf %10, %11 : vector<16x1xf32>
    %13 = math.rsqrt %12 : vector<16x1xf32>
    %14 = vector.broadcast %13 : vector<16x1xf32> to vector<16x32xf32>
    %15 = arith.mulf %3, %14 : vector<16x32xf32>
    %16 = vector.broadcast %5 : vector<1x32xf32> to vector<16x32xf32>
    %17 = arith.mulf %15, %16 : vector<16x32xf32>
    %18 = arith.truncf %17 : vector<16x32xf32> to vector<16x32xbf16>
    %c0_7 = arith.constant 0 : index
    %c0_8 = arith.constant 0 : index
    %c0_9 = arith.constant 0 : index
    %19 = vector.load %arg5[%c0_7, %c0_8, %c0_9] : memref<1x32x64xbf16, #tpu.memory_space<vmem>>, vector<1x32x64xbf16>
    %20 = vector.shape_cast %19 : vector<1x32x64xbf16> to vector<32x64xbf16>
    %cst_10 = arith.constant dense<0.000000e+00> : vector<16x64xf32>
    %21 = tpu.matmul %18, %20, %cst_10 {dimension_numbers = #tpu.dot_dimension_numbers<[1], [0], [0], [1], [0, 0, 1, 1], [], []>} : vector<16x32xbf16>, vector<32x64xbf16>, vector<16x64xf32> -> vector<16x64xf32>
    %c0_11 = arith.constant 0 : index
    %c0_12 = arith.constant 0 : index
    %c0_13 = arith.constant 0 : index
    %22 = vector.load %arg6[%c0_11, %c0_12, %c0_13] : memref<1x1x64xf32, #tpu.memory_space<vmem>>, vector<1x1x64xf32>
    %23 = vector.shape_cast %22 : vector<1x1x64xf32> to vector<1x64xf32>
    %24 = vector.broadcast %23 : vector<1x64xf32> to vector<16x64xf32>
    %25 = arith.addf %21, %24 : vector<16x64xf32>
    %26 = vector.extract_strided_slice %25 {offsets = [0, 0], sizes = [16, 48], strides = [1, 1]} : vector<16x64xf32> to vector<16x48xf32>
    %c0_14 = arith.constant 0 : index
    %c0_15 = arith.constant 0 : index
    %27 = vector.load %arg3[%c0_14, %c0_15] : memref<16x48xf32, #tpu.memory_space<vmem>>, vector<16x48xf32>
    %28 = arith.mulf %26, %27 : vector<16x48xf32>
    %29 = vector.extract_strided_slice %26 {offsets = [0, 4], sizes = [16, 4], strides = [1, 1]} : vector<16x48xf32> to vector<16x4xf32>
    %30 = vector.extract_strided_slice %26 {offsets = [0, 0], sizes = [16, 4], strides = [1, 1]} : vector<16x48xf32> to vector<16x4xf32>
    %31 = vector.extract_strided_slice %26 {offsets = [0, 12], sizes = [16, 4], strides = [1, 1]} : vector<16x48xf32> to vector<16x4xf32>
    %32 = vector.extract_strided_slice %26 {offsets = [0, 8], sizes = [16, 4], strides = [1, 1]} : vector<16x48xf32> to vector<16x4xf32>
    %33 = vector.extract_strided_slice %26 {offsets = [0, 20], sizes = [16, 4], strides = [1, 1]} : vector<16x48xf32> to vector<16x4xf32>
    %34 = vector.extract_strided_slice %26 {offsets = [0, 16], sizes = [16, 4], strides = [1, 1]} : vector<16x48xf32> to vector<16x4xf32>
    %35 = vector.extract_strided_slice %26 {offsets = [0, 28], sizes = [16, 4], strides = [1, 1]} : vector<16x48xf32> to vector<16x4xf32>
    %36 = vector.extract_strided_slice %26 {offsets = [0, 24], sizes = [16, 4], strides = [1, 1]} : vector<16x48xf32> to vector<16x4xf32>
    %37 = vector.extract_strided_slice %26 {offsets = [0, 36], sizes = [16, 4], strides = [1, 1]} : vector<16x48xf32> to vector<16x4xf32>
    %38 = vector.extract_strided_slice %26 {offsets = [0, 32], sizes = [16, 4], strides = [1, 1]} : vector<16x48xf32> to vector<16x4xf32>
    %39 = vector.extract_strided_slice %26 {offsets = [0, 44], sizes = [16, 4], strides = [1, 1]} : vector<16x48xf32> to vector<16x4xf32>
    %40 = vector.extract_strided_slice %26 {offsets = [0, 40], sizes = [16, 4], strides = [1, 1]} : vector<16x48xf32> to vector<16x4xf32>
    %41 = tpu.concatenate %29, %30, %31, %32, %33, %34, %35, %36, %37, %38, %39, %40 in 1 : vector<16x4xf32>, vector<16x4xf32>, vector<16x4xf32>, vector<16x4xf32>, vector<16x4xf32>, vector<16x4xf32>, vector<16x4xf32>, vector<16x4xf32>, vector<16x4xf32>, vector<16x4xf32>, vector<16x4xf32>, vector<16x4xf32> -> vector<16x48xf32>
    %c0_16 = arith.constant 0 : index
    %c0_17 = arith.constant 0 : index
    %42 = vector.load %arg4[%c0_16, %c0_17] : memref<16x48xf32, #tpu.memory_space<vmem>>, vector<16x48xf32>
    %43 = arith.mulf %41, %42 : vector<16x48xf32>
    %44 = arith.addf %28, %43 : vector<16x48xf32>
    %45 = vector.extract_strided_slice %25 {offsets = [0, 48], sizes = [16, 16], strides = [1, 1]} : vector<16x64xf32> to vector<16x16xf32>
    %46 = vector.extract_strided_slice %44 {offsets = [0, 0], sizes = [8, 8], strides = [1, 1]} : vector<16x48xf32> to vector<8x8xf32>
    %c0_18 = arith.constant 0 : index
    %c0_19 = arith.constant 0 : index
    %c0_20 = arith.constant 0 : index
    %47 = vector.load %arg16[%c0_18, %c0_19, %c0_20] : memref<4x16x8xf32, #tpu.memory_space<vmem>>, vector<1x8x8xf32>
    %48 = vector.shape_cast %47 : vector<1x8x8xf32> to vector<8x8xf32>
    %49 = vector.shape_cast %46 : vector<8x8xf32> to vector<1x8x8xf32>
    tpu.vector_store %arg16[%c0_18, %c0_19, %c0_20], %49 {strides = array<i32>} : memref<4x16x8xf32, #tpu.memory_space<vmem>>, vector<1x8x8xf32>,
    %50 = vector.extract_strided_slice %44 {offsets = [0, 8], sizes = [8, 8], strides = [1, 1]} : vector<16x48xf32> to vector<8x8xf32>
    %c0_21 = arith.constant 0 : index
    %c8 = arith.constant 8 : index
    %c0_22 = arith.constant 0 : index
    %51 = vector.load %arg16[%c0_21, %c8, %c0_22] : memref<4x16x8xf32, #tpu.memory_space<vmem>>, vector<1x8x8xf32>
    %52 = vector.shape_cast %51 : vector<1x8x8xf32> to vector<8x8xf32>
    %53 = vector.shape_cast %50 : vector<8x8xf32> to vector<1x8x8xf32>
    tpu.vector_store %arg16[%c0_21, %c8, %c0_22], %53 {strides = array<i32>} : memref<4x16x8xf32, #tpu.memory_space<vmem>>, vector<1x8x8xf32>,
    %54 = vector.extract_strided_slice %44 {offsets = [0, 32], sizes = [8, 8], strides = [1, 1]} : vector<16x48xf32> to vector<8x8xf32>
    %c0_23 = arith.constant 0 : index
    %c0_24 = arith.constant 0 : index
    %c0_25 = arith.constant 0 : index
    %55 = vector.load %arg17[%c0_23, %c0_24, %c0_25] : memref<4x8x8xf32, #tpu.memory_space<vmem>>, vector<1x8x8xf32>
    %56 = vector.shape_cast %55 : vector<1x8x8xf32> to vector<8x8xf32>
    %57 = vector.shape_cast %54 : vector<8x8xf32> to vector<1x8x8xf32>
    tpu.vector_store %arg17[%c0_23, %c0_24, %c0_25], %57 {strides = array<i32>} : memref<4x8x8xf32, #tpu.memory_space<vmem>>, vector<1x8x8xf32>,
    %58 = vector.extract_strided_slice %45 {offsets = [0, 0], sizes = [8, 8], strides = [1, 1]} : vector<16x16xf32> to vector<8x8xf32>
    %c0_26 = arith.constant 0 : index
    %c0_27 = arith.constant 0 : index
    %c0_28 = arith.constant 0 : index
    %59 = vector.load %arg18[%c0_26, %c0_27, %c0_28] : memref<4x8x8xf32, #tpu.memory_space<vmem>>, vector<1x8x8xf32>
    %60 = vector.shape_cast %59 : vector<1x8x8xf32> to vector<8x8xf32>
    %61 = vector.shape_cast %58 : vector<8x8xf32> to vector<1x8x8xf32>
    tpu.vector_store %arg18[%c0_26, %c0_27, %c0_28], %61 {strides = array<i32>} : memref<4x8x8xf32, #tpu.memory_space<vmem>>, vector<1x8x8xf32>,
    %62 = vector.extract_strided_slice %44 {offsets = [0, 16], sizes = [8, 8], strides = [1, 1]} : vector<16x48xf32> to vector<8x8xf32>
    %c1 = arith.constant 1 : index
    %c0_29 = arith.constant 0 : index
    %c0_30 = arith.constant 0 : index
    %63 = vector.load %arg16[%c1, %c0_29, %c0_30] : memref<4x16x8xf32, #tpu.memory_space<vmem>>, vector<1x8x8xf32>
    %64 = vector.shape_cast %63 : vector<1x8x8xf32> to vector<8x8xf32>
    %65 = vector.shape_cast %62 : vector<8x8xf32> to vector<1x8x8xf32>
    tpu.vector_store %arg16[%c1, %c0_29, %c0_30], %65 {strides = array<i32>} : memref<4x16x8xf32, #tpu.memory_space<vmem>>, vector<1x8x8xf32>,
    %66 = vector.extract_strided_slice %44 {offsets = [0, 24], sizes = [8, 8], strides = [1, 1]} : vector<16x48xf32> to vector<8x8xf32>
    %c1_31 = arith.constant 1 : index
    %c8_32 = arith.constant 8 : index
    %c0_33 = arith.constant 0 : index
    %67 = vector.load %arg16[%c1_31, %c8_32, %c0_33] : memref<4x16x8xf32, #tpu.memory_space<vmem>>, vector<1x8x8xf32>
    %68 = vector.shape_cast %67 : vector<1x8x8xf32> to vector<8x8xf32>
    %69 = vector.shape_cast %66 : vector<8x8xf32> to vector<1x8x8xf32>
    tpu.vector_store %arg16[%c1_31, %c8_32, %c0_33], %69 {strides = array<i32>} : memref<4x16x8xf32, #tpu.memory_space<vmem>>, vector<1x8x8xf32>,
    %70 = vector.extract_strided_slice %44 {offsets = [0, 40], sizes = [8, 8], strides = [1, 1]} : vector<16x48xf32> to vector<8x8xf32>
    %c1_34 = arith.constant 1 : index
    %c0_35 = arith.constant 0 : index
    %c0_36 = arith.constant 0 : index
    %71 = vector.load %arg17[%c1_34, %c0_35, %c0_36] : memref<4x8x8xf32, #tpu.memory_space<vmem>>, vector<1x8x8xf32>
    %72 = vector.shape_cast %71 : vector<1x8x8xf32> to vector<8x8xf32>
    %73 = vector.shape_cast %70 : vector<8x8xf32> to vector<1x8x8xf32>
    tpu.vector_store %arg17[%c1_34, %c0_35, %c0_36], %73 {strides = array<i32>} : memref<4x8x8xf32, #tpu.memory_space<vmem>>, vector<1x8x8xf32>,
    %74 = vector.extract_strided_slice %45 {offsets = [0, 8], sizes = [8, 8], strides = [1, 1]} : vector<16x16xf32> to vector<8x8xf32>
    %c1_37 = arith.constant 1 : index
    %c0_38 = arith.constant 0 : index
    %c0_39 = arith.constant 0 : index
    %75 = vector.load %arg18[%c1_37, %c0_38, %c0_39] : memref<4x8x8xf32, #tpu.memory_space<vmem>>, vector<1x8x8xf32>
    %76 = vector.shape_cast %75 : vector<1x8x8xf32> to vector<8x8xf32>
    %77 = vector.shape_cast %74 : vector<8x8xf32> to vector<1x8x8xf32>
    tpu.vector_store %arg18[%c1_37, %c0_38, %c0_39], %77 {strides = array<i32>} : memref<4x8x8xf32, #tpu.memory_space<vmem>>, vector<1x8x8xf32>,
    %78 = vector.extract_strided_slice %44 {offsets = [8, 0], sizes = [8, 8], strides = [1, 1]} : vector<16x48xf32> to vector<8x8xf32>
    %c2 = arith.constant 2 : index
    %c0_40 = arith.constant 0 : index
    %c0_41 = arith.constant 0 : index
    %79 = vector.load %arg16[%c2, %c0_40, %c0_41] : memref<4x16x8xf32, #tpu.memory_space<vmem>>, vector<1x8x8xf32>
    %80 = vector.shape_cast %79 : vector<1x8x8xf32> to vector<8x8xf32>
    %81 = vector.shape_cast %78 : vector<8x8xf32> to vector<1x8x8xf32>
    tpu.vector_store %arg16[%c2, %c0_40, %c0_41], %81 {strides = array<i32>} : memref<4x16x8xf32, #tpu.memory_space<vmem>>, vector<1x8x8xf32>,
    %82 = vector.extract_strided_slice %44 {offsets = [8, 8], sizes = [8, 8], strides = [1, 1]} : vector<16x48xf32> to vector<8x8xf32>
    %c2_42 = arith.constant 2 : index
    %c8_43 = arith.constant 8 : index
    %c0_44 = arith.constant 0 : index
    %83 = vector.load %arg16[%c2_42, %c8_43, %c0_44] : memref<4x16x8xf32, #tpu.memory_space<vmem>>, vector<1x8x8xf32>
    %84 = vector.shape_cast %83 : vector<1x8x8xf32> to vector<8x8xf32>
    %85 = vector.shape_cast %82 : vector<8x8xf32> to vector<1x8x8xf32>
    tpu.vector_store %arg16[%c2_42, %c8_43, %c0_44], %85 {strides = array<i32>} : memref<4x16x8xf32, #tpu.memory_space<vmem>>, vector<1x8x8xf32>,
    %86 = vector.extract_strided_slice %44 {offsets = [8, 32], sizes = [8, 8], strides = [1, 1]} : vector<16x48xf32> to vector<8x8xf32>
    %c2_45 = arith.constant 2 : index
    %c0_46 = arith.constant 0 : index
    %c0_47 = arith.constant 0 : index
    %87 = vector.load %arg17[%c2_45, %c0_46, %c0_47] : memref<4x8x8xf32, #tpu.memory_space<vmem>>, vector<1x8x8xf32>
    %88 = vector.shape_cast %87 : vector<1x8x8xf32> to vector<8x8xf32>
    %89 = vector.shape_cast %86 : vector<8x8xf32> to vector<1x8x8xf32>
    tpu.vector_store %arg17[%c2_45, %c0_46, %c0_47], %89 {strides = array<i32>} : memref<4x8x8xf32, #tpu.memory_space<vmem>>, vector<1x8x8xf32>,
    %90 = vector.extract_strided_slice %45 {offsets = [8, 0], sizes = [8, 8], strides = [1, 1]} : vector<16x16xf32> to vector<8x8xf32>
    %c2_48 = arith.constant 2 : index
    %c0_49 = arith.constant 0 : index
    %c0_50 = arith.constant 0 : index
    %91 = vector.load %arg18[%c2_48, %c0_49, %c0_50] : memref<4x8x8xf32, #tpu.memory_space<vmem>>, vector<1x8x8xf32>
    %92 = vector.shape_cast %91 : vector<1x8x8xf32> to vector<8x8xf32>
    %93 = vector.shape_cast %90 : vector<8x8xf32> to vector<1x8x8xf32>
    tpu.vector_store %arg18[%c2_48, %c0_49, %c0_50], %93 {strides = array<i32>} : memref<4x8x8xf32, #tpu.memory_space<vmem>>, vector<1x8x8xf32>,
    %94 = vector.extract_strided_slice %44 {offsets = [8, 16], sizes = [8, 8], strides = [1, 1]} : vector<16x48xf32> to vector<8x8xf32>
    %c3 = arith.constant 3 : index
    %c0_51 = arith.constant 0 : index
    %c0_52 = arith.constant 0 : index
    %95 = vector.load %arg16[%c3, %c0_51, %c0_52] : memref<4x16x8xf32, #tpu.memory_space<vmem>>, vector<1x8x8xf32>
    %96 = vector.shape_cast %95 : vector<1x8x8xf32> to vector<8x8xf32>
    %97 = vector.shape_cast %94 : vector<8x8xf32> to vector<1x8x8xf32>
    tpu.vector_store %arg16[%c3, %c0_51, %c0_52], %97 {strides = array<i32>} : memref<4x16x8xf32, #tpu.memory_space<vmem>>, vector<1x8x8xf32>,
    %98 = vector.extract_strided_slice %44 {offsets = [8, 24], sizes = [8, 8], strides = [1, 1]} : vector<16x48xf32> to vector<8x8xf32>
    %c3_53 = arith.constant 3 : index
    %c8_54 = arith.constant 8 : index
    %c0_55 = arith.constant 0 : index
    %99 = vector.load %arg16[%c3_53, %c8_54, %c0_55] : memref<4x16x8xf32, #tpu.memory_space<vmem>>, vector<1x8x8xf32>
    %100 = vector.shape_cast %99 : vector<1x8x8xf32> to vector<8x8xf32>
    %101 = vector.shape_cast %98 : vector<8x8xf32> to vector<1x8x8xf32>
    tpu.vector_store %arg16[%c3_53, %c8_54, %c0_55], %101 {strides = array<i32>} : memref<4x16x8xf32, #tpu.memory_space<vmem>>, vector<1x8x8xf32>,
    %102 = vector.extract_strided_slice %44 {offsets = [8, 40], sizes = [8, 8], strides = [1, 1]} : vector<16x48xf32> to vector<8x8xf32>
    %c3_56 = arith.constant 3 : index
    %c0_57 = arith.constant 0 : index
    %c0_58 = arith.constant 0 : index
    %103 = vector.load %arg17[%c3_56, %c0_57, %c0_58] : memref<4x8x8xf32, #tpu.memory_space<vmem>>, vector<1x8x8xf32>
    %104 = vector.shape_cast %103 : vector<1x8x8xf32> to vector<8x8xf32>
    %105 = vector.shape_cast %102 : vector<8x8xf32> to vector<1x8x8xf32>
    tpu.vector_store %arg17[%c3_56, %c0_57, %c0_58], %105 {strides = array<i32>} : memref<4x8x8xf32, #tpu.memory_space<vmem>>, vector<1x8x8xf32>,
    %106 = vector.extract_strided_slice %45 {offsets = [8, 8], sizes = [8, 8], strides = [1, 1]} : vector<16x16xf32> to vector<8x8xf32>
    %c3_59 = arith.constant 3 : index
    %c0_60 = arith.constant 0 : index
    %c0_61 = arith.constant 0 : index
    %107 = vector.load %arg18[%c3_59, %c0_60, %c0_61] : memref<4x8x8xf32, #tpu.memory_space<vmem>>, vector<1x8x8xf32>
    %108 = vector.shape_cast %107 : vector<1x8x8xf32> to vector<8x8xf32>
    %109 = vector.shape_cast %106 : vector<8x8xf32> to vector<1x8x8xf32>
    tpu.vector_store %arg18[%c3_59, %c0_60, %c0_61], %109 {strides = array<i32>} : memref<4x8x8xf32, #tpu.memory_space<vmem>>, vector<1x8x8xf32>,
    %c0_62 = arith.constant 0 : index
    %c0_63 = arith.constant 0 : index
    %c0_64 = arith.constant 0 : index
    %110 = vector.load %arg16[%c0_62, %c0_63, %c0_64] : memref<4x16x8xf32, #tpu.memory_space<vmem>>, vector<4x16x8xf32>
    %111 = arith.truncf %110 : vector<4x16x8xf32> to vector<4x16x8xbf16>
    %c0_65 = arith.constant 0 : index
    %c0_66 = arith.constant 0 : index
    %c0_67 = arith.constant 0 : index
    %112 = vector.load %arg17[%c0_65, %c0_66, %c0_67] : memref<4x8x8xf32, #tpu.memory_space<vmem>>, vector<4x8x8xf32>
    %113 = arith.truncf %112 : vector<4x8x8xf32> to vector<4x8x8xbf16>
    %c0_68 = arith.constant 0 : index
    %c0_69 = arith.constant 0 : index
    %c0_70 = arith.constant 0 : index
    %114 = vector.load %arg18[%c0_68, %c0_69, %c0_70] : memref<4x8x8xf32, #tpu.memory_space<vmem>>, vector<4x8x8xf32>
    %115 = arith.truncf %114 : vector<4x8x8xf32> to vector<4x8x8xbf16>
    "tpu.trace_start"() <{level = 10 : i32, message = "gme,gke->gmk"}> : () -> ()
    %cst_71 = arith.constant dense<0.000000e+00> : vector<4x16x8xf32>
    %116 = tpu.matmul %111, %113, %cst_71 {dimension_numbers = #tpu.dot_dimension_numbers<[2], [2], [1], [1], [0, 0, 0, 1, 1, 1], [0], [0]>} : vector<4x16x8xbf16>, vector<4x8x8xbf16>, vector<4x16x8xf32> -> vector<4x16x8xf32>
    "tpu.trace_stop"() : () -> ()
    %c0_72 = arith.constant 0 : index
    %c0_73 = arith.constant 0 : index
    %c0_74 = arith.constant 0 : index
    %117 = vector.load %arg2[%c0_72, %c0_73, %c0_74] : memref<4x16x8xf32, #tpu.memory_space<vmem>>, vector<4x16x8xf32>
    %118 = arith.addf %116, %117 : vector<4x16x8xf32>
    %cst_75 = arith.constant dense<0xFF800000> : vector<4x16xf32>
    %119 = vector.multi_reduction <maximumf>, %118, %cst_75 [2] : vector<4x16x8xf32> to vector<4x16xf32>
    %120 = vector.shape_cast %119 : vector<4x16xf32> to vector<4x16x1xf32>
    %121 = vector.broadcast %120 : vector<4x16x1xf32> to vector<4x16x8xf32>
    %122 = arith.subf %118, %121 : vector<4x16x8xf32>
    %123 = math.exp %122 : vector<4x16x8xf32>
    %cst_76 = arith.constant dense<0.000000e+00> : vector<4x16xf32>
    %124 = vector.multi_reduction <add>, %123, %cst_76 [2] : vector<4x16x8xf32> to vector<4x16xf32>
    %125 = vector.shape_cast %124 : vector<4x16xf32> to vector<4x16x1xf32>
    %126 = tpu.reciprocal %125 {approx = true} : vector<4x16x1xf32> -> vector<4x16x1xf32>
    %127 = vector.broadcast %126 : vector<4x16x1xf32> to vector<4x16x8xf32>
    %128 = arith.mulf %123, %127 : vector<4x16x8xf32>
    %129 = arith.truncf %128 : vector<4x16x8xf32> to vector<4x16x8xbf16>
    "tpu.trace_start"() <{level = 10 : i32, message = "gmk,gke->gme"}> : () -> ()
    %cst_77 = arith.constant dense<0.000000e+00> : vector<4x16x8xf32>
    %130 = tpu.matmul %129, %115, %cst_77 {dimension_numbers = #tpu.dot_dimension_numbers<[2], [1], [1], [2], [0, 0, 0, 1, 1, 2], [0], [0]>} : vector<4x16x8xbf16>, vector<4x8x8xbf16>, vector<4x16x8xf32> -> vector<4x16x8xf32>
    "tpu.trace_stop"() : () -> ()
    %131 = vector.extract_strided_slice %130 {offsets = [0, 0, 0], sizes = [1, 8, 8], strides = [1, 1, 1]} : vector<4x16x8xf32> to vector<1x8x8xf32>
    %132 = vector.shape_cast %131 : vector<1x8x8xf32> to vector<8x8xf32>
    %c0_78 = arith.constant 0 : index
    %c0_79 = arith.constant 0 : index
    %133 = vector.load %arg19[%c0_78, %c0_79] : memref<16x32xf32, #tpu.memory_space<vmem>>, vector<8x8xf32>
    tpu.vector_store %arg19[%c0_78, %c0_79], %132 {strides = array<i32>} : memref<16x32xf32, #tpu.memory_space<vmem>>, vector<8x8xf32>,
    %134 = vector.extract_strided_slice %130 {offsets = [0, 8, 0], sizes = [1, 8, 8], strides = [1, 1, 1]} : vector<4x16x8xf32> to vector<1x8x8xf32>
    %135 = vector.shape_cast %134 : vector<1x8x8xf32> to vector<8x8xf32>
    %c0_80 = arith.constant 0 : index
    %c8_81 = arith.constant 8 : index
    %136 = vector.load %arg19[%c0_80, %c8_81] : memref<16x32xf32, #tpu.memory_space<vmem>>, vector<8x8xf32>
    tpu.vector_store %arg19[%c0_80, %c8_81], %135 {strides = array<i32>} : memref<16x32xf32, #tpu.memory_space<vmem>>, vector<8x8xf32>,
    %137 = vector.extract_strided_slice %130 {offsets = [1, 0, 0], sizes = [1, 8, 8], strides = [1, 1, 1]} : vector<4x16x8xf32> to vector<1x8x8xf32>
    %138 = vector.shape_cast %137 : vector<1x8x8xf32> to vector<8x8xf32>
    %c0_82 = arith.constant 0 : index
    %c16 = arith.constant 16 : index
    %139 = vector.load %arg19[%c0_82, %c16] : memref<16x32xf32, #tpu.memory_space<vmem>>, vector<8x8xf32>
    tpu.vector_store %arg19[%c0_82, %c16], %138 {strides = array<i32>} : memref<16x32xf32, #tpu.memory_space<vmem>>, vector<8x8xf32>,
    %140 = vector.extract_strided_slice %130 {offsets = [1, 8, 0], sizes = [1, 8, 8], strides = [1, 1, 1]} : vector<4x16x8xf32> to vector<1x8x8xf32>
    %141 = vector.shape_cast %140 : vector<1x8x8xf32> to vector<8x8xf32>
    %c0_83 = arith.constant 0 : index
    %c24 = arith.constant 24 : index
    %142 = vector.load %arg19[%c0_83, %c24] : memref<16x32xf32, #tpu.memory_space<vmem>>, vector<8x8xf32>
    tpu.vector_store %arg19[%c0_83, %c24], %141 {strides = array<i32>} : memref<16x32xf32, #tpu.memory_space<vmem>>, vector<8x8xf32>,
    %143 = vector.extract_strided_slice %130 {offsets = [2, 0, 0], sizes = [1, 8, 8], strides = [1, 1, 1]} : vector<4x16x8xf32> to vector<1x8x8xf32>
    %144 = vector.shape_cast %143 : vector<1x8x8xf32> to vector<8x8xf32>
    %c8_84 = arith.constant 8 : index
    %c0_85 = arith.constant 0 : index
    %145 = vector.load %arg19[%c8_84, %c0_85] : memref<16x32xf32, #tpu.memory_space<vmem>>, vector<8x8xf32>
    tpu.vector_store %arg19[%c8_84, %c0_85], %144 {strides = array<i32>} : memref<16x32xf32, #tpu.memory_space<vmem>>, vector<8x8xf32>,
    %146 = vector.extract_strided_slice %130 {offsets = [2, 8, 0], sizes = [1, 8, 8], strides = [1, 1, 1]} : vector<4x16x8xf32> to vector<1x8x8xf32>
    %147 = vector.shape_cast %146 : vector<1x8x8xf32> to vector<8x8xf32>
    %c8_86 = arith.constant 8 : index
    %c8_87 = arith.constant 8 : index
    %148 = vector.load %arg19[%c8_86, %c8_87] : memref<16x32xf32, #tpu.memory_space<vmem>>, vector<8x8xf32>
    tpu.vector_store %arg19[%c8_86, %c8_87], %147 {strides = array<i32>} : memref<16x32xf32, #tpu.memory_space<vmem>>, vector<8x8xf32>,
    %149 = vector.extract_strided_slice %130 {offsets = [3, 0, 0], sizes = [1, 8, 8], strides = [1, 1, 1]} : vector<4x16x8xf32> to vector<1x8x8xf32>
    %150 = vector.shape_cast %149 : vector<1x8x8xf32> to vector<8x8xf32>
    %c8_88 = arith.constant 8 : index
    %c16_89 = arith.constant 16 : index
    %151 = vector.load %arg19[%c8_88, %c16_89] : memref<16x32xf32, #tpu.memory_space<vmem>>, vector<8x8xf32>
    tpu.vector_store %arg19[%c8_88, %c16_89], %150 {strides = array<i32>} : memref<16x32xf32, #tpu.memory_space<vmem>>, vector<8x8xf32>,
    %152 = vector.extract_strided_slice %130 {offsets = [3, 8, 0], sizes = [1, 8, 8], strides = [1, 1, 1]} : vector<4x16x8xf32> to vector<1x8x8xf32>
    %153 = vector.shape_cast %152 : vector<1x8x8xf32> to vector<8x8xf32>
    %c8_90 = arith.constant 8 : index
    %c24_91 = arith.constant 24 : index
    %154 = vector.load %arg19[%c8_90, %c24_91] : memref<16x32xf32, #tpu.memory_space<vmem>>, vector<8x8xf32>
    tpu.vector_store %arg19[%c8_90, %c24_91], %153 {strides = array<i32>} : memref<16x32xf32, #tpu.memory_space<vmem>>, vector<8x8xf32>,
    %c0_92 = arith.constant 0 : index
    %c0_93 = arith.constant 0 : index
    %155 = vector.load %arg19[%c0_92, %c0_93] : memref<16x32xf32, #tpu.memory_space<vmem>>, vector<16x32xf32>
    %156 = arith.truncf %155 : vector<16x32xf32> to vector<16x32xbf16>
    %c0_94 = arith.constant 0 : index
    %c0_95 = arith.constant 0 : index
    %c0_96 = arith.constant 0 : index
    %157 = vector.load %arg7[%c0_94, %c0_95, %c0_96] : memref<1x32x32xbf16, #tpu.memory_space<vmem>>, vector<1x32x32xbf16>
    %158 = vector.shape_cast %157 : vector<1x32x32xbf16> to vector<32x32xbf16>
    %cst_97 = arith.constant dense<0.000000e+00> : vector<16x32xf32>
    %159 = tpu.matmul %156, %158, %cst_97 {dimension_numbers = #tpu.dot_dimension_numbers<[1], [0], [0], [1], [0, 0, 1, 1], [], []>} : vector<16x32xbf16>, vector<32x32xbf16>, vector<16x32xf32> -> vector<16x32xf32>
    %160 = arith.addf %3, %159 : vector<16x32xf32>
    %c0_98 = arith.constant 0 : index
    %c0_99 = arith.constant 0 : index
    %c0_100 = arith.constant 0 : index
    %161 = vector.load %arg9[%c0_98, %c0_99, %c0_100] : memref<1x1x32xf32, #tpu.memory_space<vmem>>, vector<1x1x32xf32>
    %162 = vector.shape_cast %161 : vector<1x1x32xf32> to vector<1x32xf32>
    %163 = arith.mulf %160, %160 : vector<16x32xf32>
    %cst_101 = arith.constant dense<0.000000e+00> : vector<16xf32>
    %164 = vector.multi_reduction <add>, %163, %cst_101 [1] : vector<16x32xf32> to vector<16xf32>
    %165 = vector.shape_cast %164 : vector<16xf32> to vector<16x1xf32>
    %cst_102 = arith.constant 3.200000e+01 : f32
    %166 = vector.broadcast %cst_102 : f32 to vector<16x1xf32>
    %167 = arith.divf %165, %166 : vector<16x1xf32>
    %cst_103 = arith.constant 9.99999997E-7 : f32
    %168 = vector.broadcast %cst_103 : f32 to vector<16x1xf32>
    %169 = arith.addf %167, %168 : vector<16x1xf32>
    %170 = math.rsqrt %169 : vector<16x1xf32>
    %171 = vector.broadcast %170 : vector<16x1xf32> to vector<16x32xf32>
    %172 = arith.mulf %160, %171 : vector<16x32xf32>
    %173 = vector.broadcast %162 : vector<1x32xf32> to vector<16x32xf32>
    %174 = arith.mulf %172, %173 : vector<16x32xf32>
    %175 = arith.truncf %174 : vector<16x32xf32> to vector<16x32xbf16>
    %c0_104 = arith.constant 0 : index
    %c0_105 = arith.constant 0 : index
    %c0_106 = arith.constant 0 : index
    %176 = vector.load %arg10[%c0_104, %c0_105, %c0_106] : memref<1x32x128xbf16, #tpu.memory_space<vmem>>, vector<1x32x128xbf16>
    %177 = vector.shape_cast %176 : vector<1x32x128xbf16> to vector<32x128xbf16>
    %cst_107 = arith.constant dense<0.000000e+00> : vector<16x128xf32>
    %178 = tpu.matmul %175, %177, %cst_107 {dimension_numbers = #tpu.dot_dimension_numbers<[1], [0], [0], [1], [0, 0, 1, 1], [], []>} : vector<16x32xbf16>, vector<32x128xbf16>, vector<16x128xf32> -> vector<16x128xf32>
    %179 = vector.extract_strided_slice %178 {offsets = [0, 0], sizes = [16, 64], strides = [1, 1]} : vector<16x128xf32> to vector<16x64xf32>
    %180 = vector.extract_strided_slice %178 {offsets = [0, 64], sizes = [16, 64], strides = [1, 1]} : vector<16x128xf32> to vector<16x64xf32>
    %181 = arith.negf %179 : vector<16x64xf32>
    %182 = math.exp %181 : vector<16x64xf32>
    %cst_108 = arith.constant 1.000000e+00 : f32
    %183 = vector.broadcast %cst_108 : f32 to vector<16x64xf32>
    %184 = arith.addf %183, %182 : vector<16x64xf32>
    %185 = arith.divf %183, %184 : vector<16x64xf32>
    %186 = arith.mulf %179, %185 : vector<16x64xf32>
    %187 = arith.mulf %186, %180 : vector<16x64xf32>
    %188 = arith.truncf %187 : vector<16x64xf32> to vector<16x64xbf16>
    %c0_109 = arith.constant 0 : index
    %c0_110 = arith.constant 0 : index
    %c0_111 = arith.constant 0 : index
    %189 = vector.load %arg11[%c0_109, %c0_110, %c0_111] : memref<1x64x32xbf16, #tpu.memory_space<vmem>>, vector<1x64x32xbf16>
    %190 = vector.shape_cast %189 : vector<1x64x32xbf16> to vector<64x32xbf16>
    %cst_112 = arith.constant dense<0.000000e+00> : vector<16x32xf32>
    %191 = tpu.matmul %188, %190, %cst_112 {dimension_numbers = #tpu.dot_dimension_numbers<[1], [0], [0], [1], [0, 0, 1, 1], [], []>} : vector<16x64xbf16>, vector<64x32xbf16>, vector<16x32xf32> -> vector<16x32xf32>
    %192 = arith.addf %160, %191 : vector<16x32xf32>
    %c0_113 = arith.constant 0 : index
    %c0_114 = arith.constant 0 : index
    %193 = vector.load %arg15[%c0_113, %c0_114] : memref<16x32xf32, #tpu.memory_space<vmem>>, vector<16x32xf32>
    tpu.vector_store %arg15[%c0_113, %c0_114], %192 {strides = array<i32>} : memref<16x32xf32, #tpu.memory_space<vmem>>, vector<16x32xf32>,
    %c1_i32 = arith.constant 1 : i32
    %194 = arith.cmpi eq, %arg0, %c1_i32 : i32
    %195 = arith.extui %194 : i1 to i32
    %c0_i32_115 = arith.constant 0 : i32
    %196 = arith.cmpi ne, %195, %c0_i32_115 : i32
    scf.if %196 {
      %c0_116 = arith.constant 0 : index
      %c0_117 = arith.constant 0 : index
      %197 = vector.load %arg12[%c0_116, %c0_117] : memref<1x32xf32, #tpu.memory_space<vmem>>, vector<1x32xf32>
      %198 = arith.mulf %192, %192 : vector<16x32xf32>
      %cst_118 = arith.constant dense<0.000000e+00> : vector<16xf32>
      %199 = vector.multi_reduction <add>, %198, %cst_118 [1] : vector<16x32xf32> to vector<16xf32>
      %200 = vector.shape_cast %199 : vector<16xf32> to vector<16x1xf32>
      %cst_119 = arith.constant 3.200000e+01 : f32
      %201 = vector.broadcast %cst_119 : f32 to vector<16x1xf32>
      %202 = arith.divf %200, %201 : vector<16x1xf32>
      %cst_120 = arith.constant 9.99999997E-7 : f32
      %203 = vector.broadcast %cst_120 : f32 to vector<16x1xf32>
      %204 = arith.addf %202, %203 : vector<16x1xf32>
      %205 = math.rsqrt %204 : vector<16x1xf32>
      %206 = vector.broadcast %205 : vector<16x1xf32> to vector<16x32xf32>
      %207 = arith.mulf %192, %206 : vector<16x32xf32>
      %208 = vector.broadcast %197 : vector<1x32xf32> to vector<16x32xf32>
      %209 = arith.mulf %207, %208 : vector<16x32xf32>
      %210 = arith.truncf %209 : vector<16x32xf32> to vector<16x32xbf16>
      %c0_121 = arith.constant 0 : index
      %c0_122 = arith.constant 0 : index
      %211 = vector.load %arg13[%c0_121, %c0_122] : memref<32x128xbf16, #tpu.memory_space<vmem>>, vector<32x128xbf16>
      %cst_123 = arith.constant dense<0.000000e+00> : vector<16x128xf32>
      %212 = tpu.matmul %210, %211, %cst_123 {dimension_numbers = #tpu.dot_dimension_numbers<[1], [0], [0], [1], [0, 0, 1, 1], [], []>} : vector<16x32xbf16>, vector<32x128xbf16>, vector<16x128xf32> -> vector<16x128xf32>
      %213 = arith.truncf %212 : vector<16x128xf32> to vector<16x128xbf16>
      %c0_124 = arith.constant 0 : index
      %c0_125 = arith.constant 0 : index
      %214 = vector.load %arg14[%c0_124, %c0_125] : memref<16x128xbf16, #tpu.memory_space<vmem>>, vector<16x128xbf16>
      tpu.vector_store %arg14[%c0_124, %c0_125], %213 {strides = array<i32>} : memref<16x128xbf16, #tpu.memory_space<vmem>>, vector<16x128xbf16>,
    } else {
    }
    return
  }
  func.func @transform_0(%arg0: i32) -> (i32, i32) {
    %c0_i32 = arith.constant 0 : i32
    %c0_i32_0 = arith.constant 0 : i32
    %c0_i32_1 = arith.constant 0 : i32
    return %c0_i32, %c0_i32_0 : i32, i32
  }
  func.func @transform_1(%arg0: i32) -> (i32, i32, i32) {
    %c0_i32 = arith.constant 0 : i32
    %c0_i32_0 = arith.constant 0 : i32
    %c0_i32_1 = arith.constant 0 : i32
    %c0_i32_2 = arith.constant 0 : i32
    return %c0_i32, %c0_i32_0, %c0_i32_1 : i32, i32, i32
  }
  func.func @transform_2(%arg0: i32) -> (i32, i32) {
    %c0_i32 = arith.constant 0 : i32
    %c0_i32_0 = arith.constant 0 : i32
    %c0_i32_1 = arith.constant 0 : i32
    return %c0_i32, %c0_i32_0 : i32, i32
  }
  func.func @transform_3(%arg0: i32) -> (i32, i32) {
    %c0_i32 = arith.constant 0 : i32
    %c0_i32_0 = arith.constant 0 : i32
    %c0_i32_1 = arith.constant 0 : i32
    return %c0_i32, %c0_i32_0 : i32, i32
  }
  func.func @transform_4(%arg0: i32) -> (i32, i32, i32) {
    %c0_i32 = arith.constant 0 : i32
    %c0_i32_0 = arith.constant 0 : i32
    %c0_i32_1 = arith.constant 0 : i32
    return %arg0, %c0_i32, %c0_i32_0 : i32, i32, i32
  }
  func.func @transform_5(%arg0: i32) -> (i32, i32, i32) {
    %c0_i32 = arith.constant 0 : i32
    %c0_i32_0 = arith.constant 0 : i32
    %c0_i32_1 = arith.constant 0 : i32
    return %arg0, %c0_i32, %c0_i32_0 : i32, i32, i32
  }
  func.func @transform_6(%arg0: i32) -> (i32, i32, i32) {
    %c0_i32 = arith.constant 0 : i32
    %c0_i32_0 = arith.constant 0 : i32
    %c0_i32_1 = arith.constant 0 : i32
    return %arg0, %c0_i32, %c0_i32_0 : i32, i32, i32
  }
  func.func @transform_7(%arg0: i32) -> (i32, i32, i32) {
    %c0_i32 = arith.constant 0 : i32
    %c0_i32_0 = arith.constant 0 : i32
    %c0_i32_1 = arith.constant 0 : i32
    return %arg0, %c0_i32, %c0_i32_0 : i32, i32, i32
  }
  func.func @transform_8(%arg0: i32) -> (i32, i32, i32) {
    %c0_i32 = arith.constant 0 : i32
    %c0_i32_0 = arith.constant 0 : i32
    %c0_i32_1 = arith.constant 0 : i32
    return %arg0, %c0_i32, %c0_i32_0 : i32, i32, i32
  }
  func.func @transform_9(%arg0: i32) -> (i32, i32, i32) {
    %c0_i32 = arith.constant 0 : i32
    %c0_i32_0 = arith.constant 0 : i32
    %c0_i32_1 = arith.constant 0 : i32
    return %arg0, %c0_i32, %c0_i32_0 : i32, i32, i32
  }
  func.func @transform_10(%arg0: i32) -> (i32, i32, i32) {
    %c0_i32 = arith.constant 0 : i32
    %c0_i32_0 = arith.constant 0 : i32
    %c0_i32_1 = arith.constant 0 : i32
    return %arg0, %c0_i32, %c0_i32_0 : i32, i32, i32
  }
  func.func @transform_11(%arg0: i32) -> (i32, i32) {
    %c0_i32 = arith.constant 0 : i32
    %c0_i32_0 = arith.constant 0 : i32
    %c0_i32_1 = arith.constant 0 : i32
    return %c0_i32, %c0_i32_0 : i32, i32
  }
  func.func @transform_12(%arg0: i32) -> (i32, i32) {
    %c0_i32 = arith.constant 0 : i32
    %c0_i32_0 = arith.constant 0 : i32
    %c0_i32_1 = arith.constant 0 : i32
    return %c0_i32, %c0_i32_0 : i32, i32
  }
  func.func @transform_13(%arg0: i32) -> (i32, i32) {
    %c0_i32 = arith.constant 0 : i32
    %c0_i32_0 = arith.constant 0 : i32
    %c0_i32_1 = arith.constant 0 : i32
    return %c0_i32, %c0_i32_0 : i32, i32
  }
}

</mosaic_0001>

<llo_original>
// kernel: last_stage_forward.1
$region0: #{last_stage_forward.1}
  #allocation0 [shape = 'u32[]', space=smem, size = 0x4, offset = 0x4, fixed_abs, tag = 'smem constant byte address 0x4 - core index']
  #allocation1 [shape = 'u32[144,128]{1,0:T(1,128)}', space=vmem, size = 0x12000, scoped, tag = 'internal scratch']
  #allocation2 [shape = 'f32[16,32]{1,0:T(8,128)}', space=vmem, size = 0x2000, scoped, tag = 'scratch operand']
  #allocation3 [shape = 'f32[4,16,8]{2,1,0:T(8,128)}', space=vmem, size = 0x8000, scoped, tag = 'scratch operand']
  #allocation4 [shape = 'f32[4,8,8]{2,1,0:T(8,128)}', space=vmem, size = 0x4000, scoped, tag = 'scratch operand']
  #allocation5 [shape = 'f32[4,8,8]{2,1,0:T(8,128)}', space=vmem, size = 0x4000, scoped, tag = 'scratch operand']
  #allocation6 [shape = 'f32[16,32]{1,0:T(8,128)}', space=vmem, size = 0x2000, scoped, tag = 'scratch operand']
  %s0 = inlined_call_operand.vmem [shape: f32[16,32], index: 0, kind: input, shape index: {}]
  %s1 = inlined_call_operand.vmem [shape: f32[4,16,8], index: 1, kind: input, shape index: {}]
  %s2 = inlined_call_operand.vmem [shape: f32[16,48], index: 2, kind: input, shape index: {}]
  %s3 = inlined_call_operand.vmem [shape: f32[16,48], index: 3, kind: input, shape index: {}]
  %s4 = inlined_call_operand.vmem [shape: bf16[2,32,64], index: 4, kind: input, shape index: {}]
  %s5 = inlined_call_operand.vmem [shape: f32[2,1,64], index: 5, kind: input, shape index: {}]
  %s6 = inlined_call_operand.vmem [shape: bf16[2,32,32], index: 6, kind: input, shape index: {}]
  %s7 = inlined_call_operand.vmem [shape: f32[2,1,32], index: 7, kind: input, shape index: {}]
  %s8 = inlined_call_operand.vmem [shape: f32[2,1,32], index: 8, kind: input, shape index: {}]
  %s9 = inlined_call_operand.vmem [shape: bf16[2,32,128], index: 9, kind: input, shape index: {}]
  %s10 = inlined_call_operand.vmem [shape: bf16[2,64,32], index: 10, kind: input, shape index: {}]
  %s11 = inlined_call_operand.vmem [shape: f32[1,32], index: 11, kind: input, shape index: {}]
  %s12 = inlined_call_operand.vmem [shape: bf16[32,128], index: 12, kind: input, shape index: {}]
  %s13 = inlined_call_operand.vmem [shape: bf16[16,128], index: 13, kind: output, shape index: {}]
  %s14 = sld [smem:[#allocation0]]
  $region93: #{last_stage_forward.1} parent=0
    _
  %s16 = ssub.s32 1, %s14
  %s17 = scalar_select 0, %s16, %s14
  loop: start=0, step=1, limit=4
  $region2: #{last_stage_forward.1} parent=0 // loop_pre_header
    _
  $region3: #{last_stage_forward.1} parent=0 // loop_header
    %s19 = sphi 0, %s23
    %p20 = scmp.ge.s32.totalorder %s19, 4
    %s27 = sphi 0, %s27
    %s29 = sphi 0, %s27
    %s30 = sphi 0, %s29
    %s44 = sphi 0, %s30
    %s48 = sphi 0, %s48
    %s50 = sphi 0, %s48
    %s51 = sphi 0, %s50
    %s65 = sphi 0, %s51
    %s69 = sphi 0, %s69
    %s71 = sphi 0, %s69
    %s72 = sphi 0, %s71
    %s86 = sphi 0, %s72
    %s90 = sphi 0, %s90
    %s92 = sphi 0, %s90
    %s93 = sphi 0, %s92
    %s107 = sphi 0, %s93
    %s113 = sphi 0, %s115
    %s116 = sphi 0, %s113
    %s117 = sphi 0, %s116
    %s133 = sphi 0, %s117
    %s139 = sphi 0, %s141
    %s142 = sphi 0, %s139
    %s143 = sphi 0, %s142
    %s159 = sphi 0, %s143
    %s165 = sphi 0, %s167
    %s168 = sphi 0, %s165
    %s169 = sphi 0, %s168
    %s185 = sphi 0, %s169
    %s191 = sphi 0, %s193
    %s194 = sphi 0, %s191
    %s195 = sphi 0, %s194
    %s211 = sphi 0, %s195
    %s217 = sphi 0, %s219
    %s220 = sphi 0, %s217
    %s221 = sphi 0, %s220
    %s237 = sphi 0, %s221
    %s243 = sphi 0, %s245
    %s246 = sphi 0, %s243
    %s247 = sphi 0, %s246
    %s263 = sphi 0, %s247
    %s269 = sphi 0, %s271
    %s272 = sphi 0, %s269
    %s273 = sphi 0, %s272
    %s289 = sphi 0, %s273
    %s293 = sphi 0, %s293
    %s295 = sphi 0, %s293
    %s296 = sphi 0, %s295
    %s310 = sphi 0, %s296
    %s314 = sphi 0, %s314
    %s316 = sphi 0, %s314
    %s317 = sphi 0, %s316
    %s331 = sphi 0, %s317
    %s335 = sphi 0, %s335
    %s337 = sphi 0, %s335
    %s338 = sphi 0, %s337
    %s352 = sphi 0, %s338
  $region4: #{last_stage_forward.1} parent=0 // loop_header_branch
    %22 = sbr.rel (%p20) target = $region8
  $region5: #{last_stage_forward.1} parent=0 // loop_body
    %s24 = ssub.s32 %s19, 1
    %s25 = ssub.s32 %s19, 2
    %s26 = sadd.s32 %s19, 1
    %s28 = sadd.s32 %s27, 1
    %p31 = scmp.eq.s32.totalorder %s19, 1
    %p32 = scmp.ne.s32.totalorder %s27, %s29
    %p33 = scmp.eq.s32.totalorder %s19, 0
    %p34 = por %p32, %p33
    %p35 = scmp.ne.s32.totalorder %s27, %s29
    %p36 = scmp.eq.s32.totalorder %s24, 1
    %p37 = por %p35, %p36
    %p38 = scmp.ne.s32.totalorder %s29, %s30
    %p39 = scmp.eq.s32.totalorder %s24, 0
    %p40 = por %p38, %p39
    %p41 = scmp.ne.s32.totalorder %s29, %s30
    %p42 = scmp.eq.s32.totalorder %s25, 1
    %p43 = por %p41, %p42
    %p45 = scmp.ne.s32.totalorder %s30, %s44
    %p46 = scmp.eq.s32.totalorder %s25, 0
    %p47 = por %p45, %p46
    %s49 = sadd.s32 %s48, 1
    %p52 = scmp.eq.s32.totalorder %s19, 1
    %p53 = scmp.ne.s32.totalorder %s48, %s50
    %p54 = scmp.eq.s32.totalorder %s19, 0
    %p55 = por %p53, %p54
    %p56 = scmp.ne.s32.totalorder %s48, %s50
    %p57 = scmp.eq.s32.totalorder %s24, 1
    %p58 = por %p56, %p57
    %p59 = scmp.ne.s32.totalorder %s50, %s51
    %p60 = scmp.eq.s32.totalorder %s24, 0
    %p61 = por %p59, %p60
    %p62 = scmp.ne.s32.totalorder %s50, %s51
    %p63 = scmp.eq.s32.totalorder %s25, 1
    %p64 = por %p62, %p63
    %p66 = scmp.ne.s32.totalorder %s51, %s65
    %p67 = scmp.eq.s32.totalorder %s25, 0
    %p68 = por %p66, %p67
    %s70 = sadd.s32 %s69, 1
    %p73 = scmp.eq.s32.totalorder %s19, 1
    %p74 = scmp.ne.s32.totalorder %s69, %s71
    %p75 = scmp.eq.s32.totalorder %s19, 0
    %p76 = por %p74, %p75
    %p77 = scmp.ne.s32.totalorder %s69, %s71
    %p78 = scmp.eq.s32.totalorder %s24, 1
    %p79 = por %p77, %p78
    %p80 = scmp.ne.s32.totalorder %s71, %s72
    %p81 = scmp.eq.s32.totalorder %s24, 0
    %p82 = por %p80, %p81
    %p83 = scmp.ne.s32.totalorder %s71, %s72
    %p84 = scmp.eq.s32.totalorder %s25, 1
    %p85 = por %p83, %p84
    %p87 = scmp.ne.s32.totalorder %s72, %s86
    %p88 = scmp.eq.s32.totalorder %s25, 0
    %p89 = por %p87, %p88
    %s91 = sadd.s32 %s90, 1
    %p94 = scmp.eq.s32.totalorder %s19, 1
    %p95 = scmp.ne.s32.totalorder %s90, %s92
    %p96 = scmp.eq.s32.totalorder %s19, 0
    %p97 = por %p95, %p96
    %p98 = scmp.ne.s32.totalorder %s90, %s92
    %p99 = scmp.eq.s32.totalorder %s24, 1
    %p100 = por %p98, %p99
    %p101 = scmp.ne.s32.totalorder %s92, %s93
    %p102 = scmp.eq.s32.totalorder %s24, 0
    %p103 = por %p101, %p102
    %p104 = scmp.ne.s32.totalorder %s92, %s93
    %p105 = scmp.eq.s32.totalorder %s25, 1
    %p106 = por %p104, %p105
    %p108 = scmp.ne.s32.totalorder %s93, %s107
    %p109 = scmp.eq.s32.totalorder %s25, 0
    %p110 = por %p108, %p109
    %s111 = ssub.s32 %s19, %s26
    %p112 = scmp.eq.s32.totalorder %s111, 0
    %s114 = sadd.s32 %s113, 1
    %s115 = scalar_select %p112, %s113, %s114
    %p118 = pneg %p112
    %p119 = scmp.eq.s32.totalorder %s19, 1
    %p120 = por %p118, %p119
    %p121 = scmp.ne.s32.totalorder %s113, %s116
    %p122 = scmp.eq.s32.totalorder %s19, 0
    %p123 = por %p121, %p122
    %p124 = scmp.ne.s32.totalorder %s113, %s116
    %p125 = scmp.eq.s32.totalorder %s24, 1
    %p126 = por %p124, %p125
    %p127 = scmp.ne.s32.totalorder %s116, %s117
    %p128 = scmp.eq.s32.totalorder %s24, 0
    %p129 = por %p127, %p128
    %p130 = scmp.ne.s32.totalorder %s116, %s117
    %p131 = scmp.eq.s32.totalorder %s25, 1
    %p132 = por %p130, %p131
    %p134 = scmp.ne.s32.totalorder %s117, %s133
    %p135 = scmp.eq.s32.totalorder %s25, 0
    %p136 = por %p134, %p135
    %s137 = ssub.s32 %s19, %s26
    %p138 = scmp.eq.s32.totalorder %s137, 0
    %s140 = sadd.s32 %s139, 1
    %s141 = scalar_select %p138, %s139, %s140
    %p144 = pneg %p138
    %p145 = scmp.eq.s32.totalorder %s19, 1
    %p146 = por %p144, %p145
    %p147 = scmp.ne.s32.totalorder %s139, %s142
    %p148 = scmp.eq.s32.totalorder %s19, 0
    %p149 = por %p147, %p148
    %p150 = scmp.ne.s32.totalorder %s139, %s142
    %p151 = scmp.eq.s32.totalorder %s24, 1
    %p152 = por %p150, %p151
    %p153 = scmp.ne.s32.totalorder %s142, %s143
    %p154 = scmp.eq.s32.totalorder %s24, 0
    %p155 = por %p153, %p154
    %p156 = scmp.ne.s32.totalorder %s142, %s143
    %p157 = scmp.eq.s32.totalorder %s25, 1
    %p158 = por %p156, %p157
    %p160 = scmp.ne.s32.totalorder %s143, %s159
    %p161 = scmp.eq.s32.totalorder %s25, 0
    %p162 = por %p160, %p161
    %s163 = ssub.s32 %s19, %s26
    %p164 = scmp.eq.s32.totalorder %s163, 0
    %s166 = sadd.s32 %s165, 1
    %s167 = scalar_select %p164, %s165, %s166
    %p170 = pneg %p164
    %p171 = scmp.eq.s32.totalorder %s19, 1
    %p172 = por %p170, %p171
    %p173 = scmp.ne.s32.totalorder %s165, %s168
    %p174 = scmp.eq.s32.totalorder %s19, 0
    %p175 = por %p173, %p174
    %p176 = scmp.ne.s32.totalorder %s165, %s168
    %p177 = scmp.eq.s32.totalorder %s24, 1
    %p178 = por %p176, %p177
    %p179 = scmp.ne.s32.totalorder %s168, %s169
    %p180 = scmp.eq.s32.totalorder %s24, 0
    %p181 = por %p179, %p180
    %p182 = scmp.ne.s32.totalorder %s168, %s169
    %p183 = scmp.eq.s32.totalorder %s25, 1
    %p184 = por %p182, %p183
    %p186 = scmp.ne.s32.totalorder %s169, %s185
    %p187 = scmp.eq.s32.totalorder %s25, 0
    %p188 = por %p186, %p187
    %s189 = ssub.s32 %s19, %s26
    %p190 = scmp.eq.s32.totalorder %s189, 0
    %s192 = sadd.s32 %s191, 1
    %s193 = scalar_select %p190, %s191, %s192
    %p196 = pneg %p190
    %p197 = scmp.eq.s32.totalorder %s19, 1
    %p198 = por %p196, %p197
    %p199 = scmp.ne.s32.totalorder %s191, %s194
    %p200 = scmp.eq.s32.totalorder %s19, 0
    %p201 = por %p199, %p200
    %p202 = scmp.ne.s32.totalorder %s191, %s194
    %p203 = scmp.eq.s32.totalorder %s24, 1
    %p204 = por %p202, %p203
    %p205 = scmp.ne.s32.totalorder %s194, %s195
    %p206 = scmp.eq.s32.totalorder %s24, 0
    %p207 = por %p205, %p206
    %p208 = scmp.ne.s32.totalorder %s194, %s195
    %p209 = scmp.eq.s32.totalorder %s25, 1
    %p210 = por %p208, %p209
    %p212 = scmp.ne.s32.totalorder %s195, %s211
    %p213 = scmp.eq.s32.totalorder %s25, 0
    %p214 = por %p212, %p213
    %s215 = ssub.s32 %s19, %s26
    %p216 = scmp.eq.s32.totalorder %s215, 0
    %s218 = sadd.s32 %s217, 1
    %s219 = scalar_select %p216, %s217, %s218
    %p222 = pneg %p216
    %p223 = scmp.eq.s32.totalorder %s19, 1
    %p224 = por %p222, %p223
    %p225 = scmp.ne.s32.totalorder %s217, %s220
    %p226 = scmp.eq.s32.totalorder %s19, 0
    %p227 = por %p225, %p226
    %p228 = scmp.ne.s32.totalorder %s217, %s220
    %p229 = scmp.eq.s32.totalorder %s24, 1
    %p230 = por %p228, %p229
    %p231 = scmp.ne.s32.totalorder %s220, %s221
    %p232 = scmp.eq.s32.totalorder %s24, 0
    %p233 = por %p231, %p232
    %p234 = scmp.ne.s32.totalorder %s220, %s221
    %p235 = scmp.eq.s32.totalorder %s25, 1
    %p236 = por %p234, %p235
    %p238 = scmp.ne.s32.totalorder %s221, %s237
    %p239 = scmp.eq.s32.totalorder %s25, 0
    %p240 = por %p238, %p239
    %s241 = ssub.s32 %s19, %s26
    %p242 = scmp.eq.s32.totalorder %s241, 0
    %s244 = sadd.s32 %s243, 1
    %s245 = scalar_select %p242, %s243, %s244
    %p248 = pneg %p242
    %p249 = scmp.eq.s32.totalorder %s19, 1
    %p250 = por %p248, %p249
    %p251 = scmp.ne.s32.totalorder %s243, %s246
    %p252 = scmp.eq.s32.totalorder %s19, 0
    %p253 = por %p251, %p252
    %p254 = scmp.ne.s32.totalorder %s243, %s246
    %p255 = scmp.eq.s32.totalorder %s24, 1
    %p256 = por %p254, %p255
    %p257 = scmp.ne.s32.totalorder %s246, %s247
    %p258 = scmp.eq.s32.totalorder %s24, 0
    %p259 = por %p257, %p258
    %p260 = scmp.ne.s32.totalorder %s246, %s247
    %p261 = scmp.eq.s32.totalorder %s25, 1
    %p262 = por %p260, %p261
    %p264 = scmp.ne.s32.totalorder %s247, %s263
    %p265 = scmp.eq.s32.totalorder %s25, 0
    %p266 = por %p264, %p265
    %s267 = ssub.s32 %s19, %s26
    %p268 = scmp.eq.s32.totalorder %s267, 0
    %s270 = sadd.s32 %s269, 1
    %s271 = scalar_select %p268, %s269, %s270
    %p274 = pneg %p268
    %p275 = scmp.eq.s32.totalorder %s19, 1
    %p276 = por %p274, %p275
    %p277 = scmp.ne.s32.totalorder %s269, %s272
    %p278 = scmp.eq.s32.totalorder %s19, 0
    %p279 = por %p277, %p278
    %p280 = scmp.ne.s32.totalorder %s269, %s272
    %p281 = scmp.eq.s32.totalorder %s24, 1
    %p282 = por %p280, %p281
    %p283 = scmp.ne.s32.totalorder %s272, %s273
    %p284 = scmp.eq.s32.totalorder %s24, 0
    %p285 = por %p283, %p284
    %p286 = scmp.ne.s32.totalorder %s272, %s273
    %p287 = scmp.eq.s32.totalorder %s25, 1
    %p288 = por %p286, %p287
    %p290 = scmp.ne.s32.totalorder %s273, %s289
    %p291 = scmp.eq.s32.totalorder %s25, 0
    %p292 = por %p290, %p291
    %s294 = sadd.s32 %s293, 1
    %p297 = scmp.eq.s32.totalorder %s19, 1
    %p298 = scmp.ne.s32.totalorder %s293, %s295
    %p299 = scmp.eq.s32.totalorder %s19, 0
    %p300 = por %p298, %p299
    %p301 = scmp.ne.s32.totalorder %s293, %s295
    %p302 = scmp.eq.s32.totalorder %s24, 1
    %p303 = por %p301, %p302
    %p304 = scmp.ne.s32.totalorder %s295, %s296
    %p305 = scmp.eq.s32.totalorder %s24, 0
    %p306 = por %p304, %p305
    %p307 = scmp.ne.s32.totalorder %s295, %s296
    %p308 = scmp.eq.s32.totalorder %s25, 1
    %p309 = por %p307, %p308
    %p311 = scmp.ne.s32.totalorder %s296, %s310
    %p312 = scmp.eq.s32.totalorder %s25, 0
    %p313 = por %p311, %p312
    %s315 = sadd.s32 %s314, 1
    %p318 = scmp.eq.s32.totalorder %s19, 1
    %p319 = scmp.ne.s32.totalorder %s314, %s316
    %p320 = scmp.eq.s32.totalorder %s19, 0
    %p321 = por %p319, %p320
    %p322 = scmp.ne.s32.totalorder %s314, %s316
    %p323 = scmp.eq.s32.totalorder %s24, 1
    %p324 = por %p322, %p323
    %p325 = scmp.ne.s32.totalorder %s316, %s317
    %p326 = scmp.eq.s32.totalorder %s24, 0
    %p327 = por %p325, %p326
    %p328 = scmp.ne.s32.totalorder %s316, %s317
    %p329 = scmp.eq.s32.totalorder %s25, 1
    %p330 = por %p328, %p329
    %p332 = scmp.ne.s32.totalorder %s317, %s331
    %p333 = scmp.eq.s32.totalorder %s25, 0
    %p334 = por %p332, %p333
    %s336 = sadd.s32 %s335, 1
    %p339 = scmp.eq.s32.totalorder %s19, 1
    %p340 = scmp.ne.s32.totalorder %s335, %s337
    %p341 = scmp.eq.s32.totalorder %s19, 0
    %p342 = por %p340, %p341
    %p343 = scmp.ne.s32.totalorder %s335, %s337
    %p344 = scmp.eq.s32.totalorder %s24, 1
    %p345 = por %p343, %p344
    %p346 = scmp.ne.s32.totalorder %s337, %s338
    %p347 = scmp.eq.s32.totalorder %s24, 0
    %p348 = por %p346, %p347
    %p349 = scmp.ne.s32.totalorder %s337, %s338
    %p350 = scmp.eq.s32.totalorder %s25, 1
    %p351 = por %p349, %p350
    %p353 = scmp.ne.s32.totalorder %s338, %s352
    %p354 = scmp.eq.s32.totalorder %s25, 0
    %p355 = por %p353, %p354
    %p356 = scmp.le.s32.totalorder 1, %s19
    %p357 = scmp.lt.s32.totalorder %s19, 3
    %p358 = pnand %p356, %p357
    %p359 = pneg %p358
    // Predicated region
    $region9: #{last_stage_forward.1} parent=5 // pred_check
      _
    $region10: #{last_stage_forward.1} parent=5 // pred_check_branch
      %361 = sbr.rel (%p358) target = $region12
    $region11: #{last_stage_forward.1} parent=5 // pred_region
      %s362 = ssub.s32 %s19, 1
      // Predicated region
      $region13: #{last_stage_forward.1} parent=11 // pred_check
        %p363 = pneg %p40
      $region14: #{last_stage_forward.1} parent=11 // pred_check_branch
        %365 = sbr.rel (%p363) target = $region16
      $region15: #{last_stage_forward.1} parent=11 // pred_region
        _
      $region16: #{last_stage_forward.1} parent=11 // pred_fallthru
        _
      // Predicated region
      $region17: #{last_stage_forward.1} parent=11 // pred_check
        %p366 = pneg %p61
      $region18: #{last_stage_forward.1} parent=11 // pred_check_branch
        %368 = sbr.rel (%p366) target = $region20
      $region19: #{last_stage_forward.1} parent=11 // pred_region
        _
      $region20: #{last_stage_forward.1} parent=11 // pred_fallthru
        _
      // Predicated region
      $region21: #{last_stage_forward.1} parent=11 // pred_check
        %p369 = pneg %p82
      $region22: #{last_stage_forward.1} parent=11 // pred_check_branch
        %371 = sbr.rel (%p369) target = $region24
      $region23: #{last_stage_forward.1} parent=11 // pred_region
        _
      $region24: #{last_stage_forward.1} parent=11 // pred_fallthru
        _
      // Predicated region
      $region25: #{last_stage_forward.1} parent=11 // pred_check
        %p372 = pneg %p103
      $region26: #{last_stage_forward.1} parent=11 // pred_check_branch
        %374 = sbr.rel (%p372) target = $region28
      $region27: #{last_stage_forward.1} parent=11 // pred_region
        _
      $region28: #{last_stage_forward.1} parent=11 // pred_fallthru
        _
      // Predicated region
      $region29: #{last_stage_forward.1} parent=11 // pred_check
        %p375 = pneg %p306
      $region30: #{last_stage_forward.1} parent=11 // pred_check_branch
        %377 = sbr.rel (%p375) target = $region32
      $region31: #{last_stage_forward.1} parent=11 // pred_region
        _
      $region32: #{last_stage_forward.1} parent=11 // pred_fallthru
        _
      // Predicated region
      $region33: #{last_stage_forward.1} parent=11 // pred_check
        %p378 = pneg %p327
      $region34: #{last_stage_forward.1} parent=11 // pred_check_branch
        %380 = sbr.rel (%p378) target = $region36
      $region35: #{last_stage_forward.1} parent=11 // pred_region
        _
      $region36: #{last_stage_forward.1} parent=11 // pred_fallthru
        _
    $region12: #{last_stage_forward.1} parent=5 // pred_fallthru
      _
    %p381 = scmp.lt.s32.totalorder %s19, 2
    // Predicated region
    $region37: #{last_stage_forward.1} parent=5 // pred_check
      %p382 = pneg %p381
    $region38: #{last_stage_forward.1} parent=5 // pred_check_branch
      %384 = sbr.rel (%p382) target = $region40
    $region39: #{last_stage_forward.1} parent=5 // pred_region
      // Predicated region
      $region41: #{last_stage_forward.1} parent=39 // pred_check
        %p385 = pneg %p123
      $region42: #{last_stage_forward.1} parent=39 // pred_check_branch
        %387 = sbr.rel (%p385) target = $region44
      $region43: #{last_stage_forward.1} parent=39 // pred_region
        %p388 = scmp.lt.s32.totalorder %s19, 1
        %s389 = scalar_select %p388, %s19, 1
        %s390 = smul.addr %s389, 4
        %s391 = smul.addr %s390, 4
        %s392 = scalar_lea.vmem %s4, %s391
      $region44: #{last_stage_forward.1} parent=39 // pred_fallthru
        _
      // Predicated region
      $region45: #{last_stage_forward.1} parent=39 // pred_check
        %p393 = pneg %p149
      $region46: #{last_stage_forward.1} parent=39 // pred_check_branch
        %395 = sbr.rel (%p393) target = $region48
      $region47: #{last_stage_forward.1} parent=39 // pred_region
        %p396 = scmp.lt.s32.totalorder %s19, 1
        %s397 = scalar_select %p396, %s19, 1
        %s398 = scalar_lea.vmem %s5, %s397
      $region48: #{last_stage_forward.1} parent=39 // pred_fallthru
        _
      // Predicated region
      $region49: #{last_stage_forward.1} parent=39 // pred_check
        %p399 = pneg %p175
      $region50: #{last_stage_forward.1} parent=39 // pred_check_branch
        %401 = sbr.rel (%p399) target = $region52
      $region51: #{last_stage_forward.1} parent=39 // pred_region
        %p402 = scmp.lt.s32.totalorder %s19, 1
        %s403 = scalar_select %p402, %s19, 1
        %s404 = smul.addr %s403, 4
        %s405 = smul.addr %s404, 4
        %s406 = scalar_lea.vmem %s6, %s405
      $region52: #{last_stage_forward.1} parent=39 // pred_fallthru
        _
      // Predicated region
      $region53: #{last_stage_forward.1} parent=39 // pred_check
        %p407 = pneg %p201
      $region54: #{last_stage_forward.1} parent=39 // pred_check_branch
        %409 = sbr.rel (%p407) target = $region56
      $region55: #{last_stage_forward.1} parent=39 // pred_region
        %p410 = scmp.lt.s32.totalorder %s19, 1
        %s411 = scalar_select %p410, %s19, 1
        %s412 = scalar_lea.vmem %s7, %s411
      $region56: #{last_stage_forward.1} parent=39 // pred_fallthru
        _
      // Predicated region
      $region57: #{last_stage_forward.1} parent=39 // pred_check
        %p413 = pneg %p227
      $region58: #{last_stage_forward.1} parent=39 // pred_check_branch
        %415 = sbr.rel (%p413) target = $region60
      $region59: #{last_stage_forward.1} parent=39 // pred_region
        %p416 = scmp.lt.s32.totalorder %s19, 1
        %s417 = scalar_select %p416, %s19, 1
        %s418 = scalar_lea.vmem %s8, %s417
      $region60: #{last_stage_forward.1} parent=39 // pred_fallthru
        _
      // Predicated region
      $region61: #{last_stage_forward.1} parent=39 // pred_check
        %p419 = pneg %p253
      $region62: #{last_stage_forward.1} parent=39 // pred_check_branch
        %421 = sbr.rel (%p419) target = $region64
      $region63: #{last_stage_forward.1} parent=39 // pred_region
        %p422 = scmp.lt.s32.totalorder %s19, 1
        %s423 = scalar_select %p422, %s19, 1
        %s424 = smul.addr %s423, 4
        %s425 = smul.addr %s424, 4
        %s426 = scalar_lea.vmem %s9, %s425
      $region64: #{last_stage_forward.1} parent=39 // pred_fallthru
        _
      // Predicated region
      $region65: #{last_stage_forward.1} parent=39 // pred_check
        %p427 = pneg %p279
      $region66: #{last_stage_forward.1} parent=39 // pred_check_branch
        %429 = sbr.rel (%p427) target = $region68
      $region67: #{last_stage_forward.1} parent=39 // pred_region
        %p430 = scmp.lt.s32.totalorder %s19, 1
        %s431 = scalar_select %p430, %s19, 1
        %s432 = smul.addr %s431, 8
        %s433 = smul.addr %s432, 4
        %s434 = scalar_lea.vmem %s10, %s433
      $region68: #{last_stage_forward.1} parent=39 // pred_fallthru
        _
    $region40: #{last_stage_forward.1} parent=5 // pred_fallthru
      _
    %p435 = scmp.le.s32.totalorder 1, %s19
    %p436 = scmp.lt.s32.totalorder %s19, 3
    %p437 = pnand %p435, %p436
    %p438 = pneg %p437
    // Predicated region
    $region69: #{last_stage_forward.1} parent=5 // pred_check
      _
    $region70: #{last_stage_forward.1} parent=5 // pred_check_branch
      %440 = sbr.rel (%p437) target = $region72
    $region71: #{last_stage_forward.1} parent=5 // pred_region
      %s441 = ssub.s32 %s19, 1
      %p442 = pneg %p40
      %p443 = pneg %p37
      %p444 = pneg %p61
      %p445 = pneg %p58
      %p446 = pneg %p82
      %p447 = pneg %p79
      %p448 = pneg %p103
      %p449 = pneg %p100
      %p450 = scmp.lt.s32.totalorder %s24, 1
      %s451 = scalar_select %p450, %s24, 1
      %s452 = smul.addr %s451, 4
      %s453 = smul.addr %s452, 4
      %s454 = scalar_lea.vmem %s4, %s453
      %p455 = pneg %p129
      %p456 = pneg %p126
      %p457 = scmp.lt.s32.totalorder %s24, 1
      %s458 = scalar_select %p457, %s24, 1
      %s459 = scalar_lea.vmem %s5, %s458
      %p460 = pneg %p155
      %p461 = pneg %p152
      %p462 = scmp.lt.s32.totalorder %s24, 1
      %s463 = scalar_select %p462, %s24, 1
      %s464 = smul.addr %s463, 4
      %s465 = smul.addr %s464, 4
      %s466 = scalar_lea.vmem %s6, %s465
      %p467 = pneg %p181
      %p468 = pneg %p178
      %p469 = scmp.lt.s32.totalorder %s24, 1
      %s470 = scalar_select %p469, %s24, 1
      %s471 = scalar_lea.vmem %s7, %s470
      %p472 = pneg %p207
      %p473 = pneg %p204
      %p474 = scmp.lt.s32.totalorder %s24, 1
      %s475 = scalar_select %p474, %s24, 1
      %s476 = scalar_lea.vmem %s8, %s475
      %p477 = pneg %p233
      %p478 = pneg %p230
      %p479 = scmp.lt.s32.totalorder %s24, 1
      %s480 = scalar_select %p479, %s24, 1
      %s481 = smul.addr %s480, 4
      %s482 = smul.addr %s481, 4
      %s483 = scalar_lea.vmem %s9, %s482
      %p484 = pneg %p259
      %p485 = pneg %p256
      %p486 = scmp.lt.s32.totalorder %s24, 1
      %s487 = scalar_select %p486, %s24, 1
      %s488 = smul.addr %s487, 8
      %s489 = smul.addr %s488, 4
      %s490 = scalar_lea.vmem %s10, %s489
      %p491 = pneg %p285
      %p492 = pneg %p282
      %p493 = pneg %p306
      %p494 = pneg %p303
      %p495 = pneg %p327
      %p496 = pneg %p324
      %p497 = pneg %p348
      %p498 = pneg %p345
      %p499 = scmp.lt.s32.totalorder %s24, 1
      %s500 = scalar_select %p499, %s24, 1
      %s501 = smul.addr %s500, 4
      %s502 = smul.addr %s501, 4
      %s503 = scalar_lea.vmem %s4, %s502
      %p504 = scmp.lt.s32.totalorder %s24, 1
      %s505 = scalar_select %p504, %s24, 1
      %s506 = scalar_lea.vmem %s5, %s505
      %p507 = scmp.lt.s32.totalorder %s24, 1
      %s508 = scalar_select %p507, %s24, 1
      %s509 = smul.addr %s508, 4
      %s510 = smul.addr %s509, 4
      %s511 = scalar_lea.vmem %s6, %s510
      %p512 = scmp.lt.s32.totalorder %s24, 1
      %s513 = scalar_select %p512, %s24, 1
      %s514 = scalar_lea.vmem %s7, %s513
      %p515 = scmp.lt.s32.totalorder %s24, 1
      %s516 = scalar_select %p515, %s24, 1
      %s517 = scalar_lea.vmem %s8, %s516
      %p518 = scmp.lt.s32.totalorder %s24, 1
      %s519 = scalar_select %p518, %s24, 1
      %s520 = smul.addr %s519, 4
      %s521 = smul.addr %s520, 4
      %s522 = scalar_lea.vmem %s9, %s521
      %p523 = scmp.lt.s32.totalorder %s24, 1
      %s524 = scalar_select %p523, %s24, 1
      %s525 = smul.addr %s524, 8
      %s526 = smul.addr %s525, 4
      %s527 = scalar_lea.vmem %s10, %s526
      %p529 = scmp.eq.s32.totalorder %s24, 0
      // Predicated region
      $region73: #{last_stage_forward.1} parent=71 // pred_check
        %p530 = pneg %p529
      $region74: #{last_stage_forward.1} parent=71 // pred_check_branch
        %532 = sbr.rel (%p530) target = $region76
      $region75: #{last_stage_forward.1} parent=71 // pred_region
        %v533 = vld [vmem:[%s0] sm:$0xff]
        %v534 = vld [vmem:[%s0 + $0x8] sm:$0xff]
        %vm535 = vcmask 261120
        %536 = vst.msk [vmem:[#allocation2] sm:$0xff] %vm535, %v533
        %537 = vst.msk [vmem:[#allocation2 + $0x8] sm:$0xff] %vm535, %v534
      $region76: #{last_stage_forward.1} parent=71 // pred_fallthru
        _
      %v538 = vld [vmem:[#allocation2] sm:$0xff]
      %v539 = vld [vmem:[#allocation2 + $0x8] sm:$0xff]
      %v540 = vld [vmem:[%s514] sm:$0x1]
      %v541 = vmul.f32 %v538, %v538
      %v542 = vmul.f32 %v539, %v539
      %vm543 = vcmask 261120
      %v544 = vsel %vm543, %v541, 0.0
      %545 = vadd.xlane.f32.xlu0 %v544
      %v546 = vpop.xlane.xlu0 %545
      %v547 = vsel %vm543, %v542, 0.0
      %548 = vadd.xlane.f32.xlu0 %v547
      %v549 = vpop.xlane.xlu0 %548
      %v550 = vrcp.pop 32.0
      %v551 = vmul.f32 %v546, %v550
      %v552 = vmul.f32 %v549, %v550
      %v553 = vadd.f32 %v551, 1e-06
      %v554 = vadd.f32 %v552, 1e-06
      %v555 = vrsqrt.pop %v553
      %v556 = vrsqrt.pop %v554
      %v557 = vmul.f32 %v538, %v555
      %v558 = vmul.f32 %v539, %v556
      %v560 = vlaneseq
      %v561 = vshrl.u32 %v560, 7
      %v562 = vsub.s32 0, %v561
      %v563 = vrot.slane %v540, %v562
      %v565 = vmul.f32 %v557, %v563
      %v566 = vmul.f32 %v558, %v563
      %v567 = vpack.c.bf16 %v566, %v565
      %v568 = vld [vmem:[%s503] sm:$0xf]
      %v569 = vld [vmem:[%s503 + $0x4] sm:$0xf]
      %v570 = vld [vmem:[%s503 + $0x8] sm:$0xf]
      %v571 = vld [vmem:[%s503 + $0xc] sm:$0xf]
      %v572 = vld [vmem:[%s506] sm:$0x1]
      %v574 = vlaneseq
      %v575 = vshrl.u32 %v574, 7
      %v576 = vsub.s32 0, %v575
      %v577 = vrot.slane %v572, %v576
      %v583 = vunpack.c.l.b16 %v568
      %v584 = vunpack.c.l.b16 %v569
      %v585 = vunpack.c.l.b16 %v570
      %v586 = vunpack.c.l.b16 %v571
      %v587 = vpack.c.b16 %v584, %v583
      %v588 = vpack.c.b16 %v586, %v585
      %v592 = vsel %vm543, %v567, 0
      %594 = vmatprep.subr.bf16.mxu0 0
      %595 = vmatpush1.bf16.msra.mxu0 %v587
      %596 = vmatprep.subr.bf16.mxu0 0
      %597 = vmatpush1.bf16.msra.mxu0 %v588
      %598 = vmatprep.subr.bf16.mxu0 0
      %599 = vmatpush1.bf16.msra.mxu0 0
      %600 = vmatprep.subr.bf16.mxu0 0
      %601 = vmatpush1.bf16.msra.mxu0 0
      %602 = vmatprep.subr.bf16.mxu0 0
      %603 = vmatpush1.bf16.msra.mxu0 0
      %604 = vmatprep.subr.bf16.mxu0 0
      %605 = vmatpush1.bf16.msra.mxu0 0
      %606 = vmatprep.subr.bf16.mxu0 0
      %607 = vmatpush1.bf16.msra.mxu0 0
      %608 = vmatprep.subr.bf16.mxu0 0
      %609 = vmatpush1.bf16.msra.mxu0 0
      %610 = vmatprep.subr.bf16.mxu0 0
      %611 = vmatpush1.bf16.msra.mxu0 0
      %612 = vmatprep.subr.bf16.mxu0 0
      %613 = vmatpush1.bf16.msra.mxu0 0
      %614 = vmatprep.subr.bf16.mxu0 0
      %615 = vmatpush1.bf16.msra.mxu0 0
      %616 = vmatprep.subr.bf16.mxu0 0
      %617 = vmatpush1.bf16.msra.mxu0 0
      %618 = vmatprep.subr.bf16.mxu0 0
      %619 = vmatpush1.bf16.msra.mxu0 0
      %620 = vmatprep.subr.bf16.mxu0 0
      %621 = vmatpush1.bf16.msra.mxu0 0
      %622 = vmatprep.subr.bf16.mxu0 0
      %623 = vmatpush1.bf16.msra.mxu0 0
      %624 = vmatprep.subr.bf16.mxu0 0
      %625 = vmatpush1.bf16.msra.mxu0 0
      %626 = vmatprep.mubr.bf16.mxu0 0
      %627 = vmatmul.mubr.bf16.gmra.mrb[0].mxu0 %v592
      %v628 = vpop.f32.mrb[0].mxu0
      %v629 = vadd.f32 %v577, %v628
      %v630 = vpop.f32.mrb[0].mxu0
      %v631 = vpop.f32.mrb[0].mxu0
      %v632 = vadd.f32 %v577, %v631
      %v633 = vpop.f32.mrb[0].mxu0
      %634 = vdwg.mxu0
      %v635 = vld [vmem:[%s2] sm:$0xff]
      %v636 = vld [vmem:[%s2 + $0x8] sm:$0xff]
      %v637 = vmul.f32 %v629, %v635
      %v638 = vmul.f32 %v632, %v636
      %641 = vrot.lane.b32.xlu0 %v629, 124
      %v642 = vpop.permute.xlu0 %641
      %643 = vrot.lane.b32.xlu0 %v632, 124
      %v644 = vpop.permute.xlu0 %643
      %647 = vrot.lane.b32.xlu0 %v629, 4
      %v648 = vpop.permute.xlu0 %647
      %649 = vrot.lane.b32.xlu0 %v632, 4
      %v650 = vpop.permute.xlu0 %649
      %vm653 = vcmask 31744
      %v654 = vsel %vm653, %v642, %v648
      %v655 = vsel %vm653, %v644, %v650
      %vm656 = vcmask 64512
      %v657 = vsel %vm656, %v654, %v642
      %v658 = vsel %vm656, %v655, %v644
      %vm659 = vcmask 97280
      %v660 = vsel %vm659, %v657, %v648
      %v661 = vsel %vm659, %v658, %v650
      %vm662 = vcmask 130048
      %v663 = vsel %vm662, %v660, %v642
      %v664 = vsel %vm662, %v661, %v644
      %vm665 = vcmask 162816
      %v666 = vsel %vm665, %v663, %v648
      %v667 = vsel %vm665, %v664, %v650
      %vm668 = vcmask 195584
      %v669 = vsel %vm668, %v666, %v642
      %v670 = vsel %vm668, %v667, %v644
      %vm671 = vcmask 228352
      %v672 = vsel %vm671, %v669, %v648
      %v673 = vsel %vm671, %v670, %v650
      %v674 = vsel %vm543, %v672, %v642
      %v675 = vsel %vm543, %v673, %v644
      %vm676 = vcmask 293888
      %v677 = vsel %vm676, %v674, %v648
      %v678 = vsel %vm676, %v675, %v650
      %vm679 = vcmask 326656
      %v680 = vsel %vm679, %v677, %v642
      %v681 = vsel %vm679, %v678, %v644
      %vm682 = vcmask 359424
      %v683 = vsel %vm682, %v680, %v648
      %v684 = vsel %vm682, %v681, %v650
      %v685 = vld [vmem:[%s3] sm:$0xff]
      %v686 = vld [vmem:[%s3 + $0x8] sm:$0xff]
      %v687 = vmul.f32 %v683, %v685
      %v688 = vmul.f32 %v684, %v686
      %v689 = vadd.f32 %v637, %v687
      %v690 = vadd.f32 %v638, %v688
      %691 = vst.msk [vmem:[#allocation3] sm:$0xff] %vm656, %v689
      %693 = vrot.lane.b32.xlu0 %v689, 120
      %v694 = vpop.permute.xlu0 %693
      %696 = vst.msk [vmem:[#allocation3 + $0x8] sm:$0xff] %vm656, %v694
      %697 = vrot.lane.b32.xlu0 %v689, 96
      %v698 = vpop.permute.xlu0 %697
      %700 = vst.msk [vmem:[#allocation4] sm:$0xff] %vm656, %v698
      %701 = vrot.lane.b32.xlu0 %v629, 80
      %v702 = vpop.permute.xlu0 %701
      %704 = vst.msk [vmem:[#allocation5] sm:$0xff] %vm656, %v702
      %705 = vrot.lane.b32.xlu0 %v689, 112
      %v706 = vpop.permute.xlu0 %705
      %s708 = scalar_lea.vmem [#allocation3], 16
      %709 = vst.msk [vmem:[%s708] sm:$0xff] %vm656, %v706
      %710 = vrot.lane.b32.xlu0 %v689, 104
      %v711 = vpop.permute.xlu0 %710
      %713 = vst.msk [vmem:[%s708 + $0x8] sm:$0xff] %vm656, %v711
      %714 = vrot.lane.b32.xlu0 %v689, 88
      %v715 = vpop.permute.xlu0 %714
      %s717 = scalar_lea.vmem [#allocation4], 8
      %718 = vst.msk [vmem:[%s717] sm:$0xff] %vm656, %v715
      %719 = vrot.lane.b32.xlu0 %v629, 72
      %v720 = vpop.permute.xlu0 %719
      %s722 = scalar_lea.vmem [#allocation5], 8
      %723 = vst.msk [vmem:[%s722] sm:$0xff] %vm656, %v720
      %s724 = scalar_lea.vmem [#allocation3], 32
      %725 = vst.msk [vmem:[%s724] sm:$0xff] %vm656, %v690
      %727 = vrot.lane.b32.xlu0 %v690, 120
      %v728 = vpop.permute.xlu0 %727
      %730 = vst.msk [vmem:[%s724 + $0x8] sm:$0xff] %vm656, %v728
      %731 = vrot.lane.b32.xlu0 %v690, 96
      %v732 = vpop.permute.xlu0 %731
      %s734 = scalar_lea.vmem [#allocation4], 16
      %735 = vst.msk [vmem:[%s734] sm:$0xff] %vm656, %v732
      %736 = vrot.lane.b32.xlu0 %v632, 80
      %v737 = vpop.permute.xlu0 %736
      %s739 = scalar_lea.vmem [#allocation5], 16
      %740 = vst.msk [vmem:[%s739] sm:$0xff] %vm656, %v737
      %741 = vrot.lane.b32.xlu0 %v690, 112
      %v742 = vpop.permute.xlu0 %741
      %s744 = scalar_lea.vmem [#allocation3], 48
      %745 = vst.msk [vmem:[%s744] sm:$0xff] %vm656, %v742
      %746 = vrot.lane.b32.xlu0 %v690, 104
      %v747 = vpop.permute.xlu0 %746
      %749 = vst.msk [vmem:[%s744 + $0x8] sm:$0xff] %vm656, %v747
      %750 = vrot.lane.b32.xlu0 %v690, 88
      %v751 = vpop.permute.xlu0 %750
      %s753 = scalar_lea.vmem [#allocation4], 24
      %754 = vst.msk [vmem:[%s753] sm:$0xff] %vm656, %v751
      %755 = vrot.lane.b32.xlu0 %v632, 72
      %v756 = vpop.permute.xlu0 %755
      %s758 = scalar_lea.vmem [#allocation5], 24
      %759 = vst.msk [vmem:[%s758] sm:$0xff] %vm656, %v756
      %v760 = vld [vmem:[#allocation3] sm:$0xff]
      %v761 = vld [vmem:[#allocation3 + $0x8] sm:$0xff]
      %v762 = vld [vmem:[#allocation3 + $0x10] sm:$0xff]
      %v763 = vld [vmem:[#allocation3 + $0x18] sm:$0xff]
      %v764 = vld [vmem:[#allocation3 + $0x20] sm:$0xff]
      %v765 = vld [vmem:[#allocation3 + $0x28] sm:$0xff]
      %v766 = vld [vmem:[#allocation3 + $0x30] sm:$0xff]
      %v767 = vld [vmem:[#allocation3 + $0x38] sm:$0xff]
      %v768 = vpack.c.bf16 %v761, %v760
      %v769 = vpack.c.bf16 %v763, %v762
      %v770 = vpack.c.bf16 %v765, %v764
      %v771 = vpack.c.bf16 %v767, %v766
      %v772 = vld [vmem:[#allocation4] sm:$0xff]
      %v773 = vld [vmem:[#allocation4 + $0x8] sm:$0xff]
      %v774 = vld [vmem:[#allocation4 + $0x10] sm:$0xff]
      %v775 = vld [vmem:[#allocation4 + $0x18] sm:$0xff]
      %v776 = vpack.c.bf16 %v772, %v772
      %v777 = vpack.c.bf16 %v773, %v773
      %v778 = vpack.c.bf16 %v774, %v774
      %v779 = vpack.c.bf16 %v775, %v775
      %v780 = vld [vmem:[#allocation5] sm:$0xff]
      %v781 = vld [vmem:[#allocation5 + $0x8] sm:$0xff]
      %v782 = vld [vmem:[#allocation5 + $0x10] sm:$0xff]
      %v783 = vld [vmem:[#allocation5 + $0x18] sm:$0xff]
      %v784 = vpack.c.bf16 %v780, %v780
      %v785 = vpack.c.bf16 %v781, %v781
      %v786 = vpack.c.bf16 %v782, %v782
      %v787 = vpack.c.bf16 %v783, %v783
      %v788 = vld [vmem:[%s1] sm:$0xff]
      %v789 = vld [vmem:[%s1 + $0x8] sm:$0xff]
      %v790 = vld [vmem:[%s1 + $0x10] sm:$0xff]
      %v791 = vld [vmem:[%s1 + $0x18] sm:$0xff]
      %v792 = vld [vmem:[%s1 + $0x20] sm:$0xff]
      %v793 = vld [vmem:[%s1 + $0x28] sm:$0xff]
      %v794 = vld [vmem:[%s1 + $0x30] sm:$0xff]
      %v795 = vld [vmem:[%s1 + $0x38] sm:$0xff]
      %v797 = vsel %vm656, %v768, 0
      %v800 = vsel %vm656, %v776, 0
      %802 = vmatprep.subr.bf16.mxu0 0
      %803 = vmatpush1.bf16.xpose.msra.mxu0 %v800
      %804 = vmatprep.subr.bf16.mxu0 0
      %805 = vmatpush1.bf16.xpose.msra.mxu0 0
      %806 = vmatprep.subr.bf16.mxu0 0
      %807 = vmatpush1.bf16.xpose.msra.mxu0 0
      %808 = vmatprep.subr.bf16.mxu0 0
      %809 = vmatpush1.bf16.xpose.msra.mxu0 0
      %810 = vmatprep.subr.bf16.mxu0 0
      %811 = vmatpush1.bf16.xpose.msra.mxu0 0
      %812 = vmatprep.subr.bf16.mxu0 0
      %813 = vmatpush1.bf16.xpose.msra.mxu0 0
      %814 = vmatprep.subr.bf16.mxu0 0
      %815 = vmatpush1.bf16.xpose.msra.mxu0 0
      %816 = vmatprep.subr.bf16.mxu0 0
      %817 = vmatpush1.bf16.xpose.msra.mxu0 0
      %818 = vmatprep.subr.bf16.mxu0 0
      %819 = vmatpush1.bf16.xpose.msra.mxu0 0
      %820 = vmatprep.subr.bf16.mxu0 0
      %821 = vmatpush1.bf16.xpose.msra.mxu0 0
      %822 = vmatprep.subr.bf16.mxu0 0
      %823 = vmatpush1.bf16.xpose.msra.mxu0 0
      %824 = vmatprep.subr.bf16.mxu0 0
      %825 = vmatpush1.bf16.xpose.msra.mxu0 0
      %826 = vmatprep.subr.bf16.mxu0 0
      %827 = vmatpush1.bf16.xpose.msra.mxu0 0
      %828 = vmatprep.subr.bf16.mxu0 0
      %829 = vmatpush1.bf16.xpose.msra.mxu0 0
      %830 = vmatprep.subr.bf16.mxu0 0
      %831 = vmatpush1.bf16.xpose.msra.mxu0 0
      %832 = vmatprep.subr.bf16.mxu0 0
      %833 = vmatpush1.bf16.xpose.msra.mxu0 0
      %834 = vmatprep.mubr.bf16.mxu0 0
      %835 = vmatmul.mubr.bf16.gmra.mrb[0].mxu0 %v797
      %v836 = vpop.f32.mrb[0].mxu0
      %v837 = vadd.f32 %v788, %v836
      %v838 = vpop.f32.mrb[0].mxu0
      %v839 = vpop.f32.mrb[0].mxu0
      %v840 = vadd.f32 %v789, %v839
      %v841 = vpop.f32.mrb[0].mxu0
      %842 = vdwg.mxu0
      %v844 = vsel %vm656, %v769, 0
      %v847 = vsel %vm656, %v777, 0
      %849 = vmatprep.subr.bf16.mxu0 0
      %850 = vmatpush1.bf16.xpose.msra.mxu0 %v847
      %851 = vmatprep.subr.bf16.mxu0 0
      %852 = vmatpush1.bf16.xpose.msra.mxu0 0
      %853 = vmatprep.subr.bf16.mxu0 0
      %854 = vmatpush1.bf16.xpose.msra.mxu0 0
      %855 = vmatprep.subr.bf16.mxu0 0
      %856 = vmatpush1.bf16.xpose.msra.mxu0 0
      %857 = vmatprep.subr.bf16.mxu0 0
      %858 = vmatpush1.bf16.xpose.msra.mxu0 0
      %859 = vmatprep.subr.bf16.mxu0 0
      %860 = vmatpush1.bf16.xpose.msra.mxu0 0
      %861 = vmatprep.subr.bf16.mxu0 0
      %862 = vmatpush1.bf16.xpose.msra.mxu0 0
      %863 = vmatprep.subr.bf16.mxu0 0
      %864 = vmatpush1.bf16.xpose.msra.mxu0 0
      %865 = vmatprep.subr.bf16.mxu0 0
      %866 = vmatpush1.bf16.xpose.msra.mxu0 0
      %867 = vmatprep.subr.bf16.mxu0 0
      %868 = vmatpush1.bf16.xpose.msra.mxu0 0
      %869 = vmatprep.subr.bf16.mxu0 0
      %870 = vmatpush1.bf16.xpose.msra.mxu0 0
      %871 = vmatprep.subr.bf16.mxu0 0
      %872 = vmatpush1.bf16.xpose.msra.mxu0 0
      %873 = vmatprep.subr.bf16.mxu0 0
      %874 = vmatpush1.bf16.xpose.msra.mxu0 0
      %875 = vmatprep.subr.bf16.mxu0 0
      %876 = vmatpush1.bf16.xpose.msra.mxu0 0
      %877 = vmatprep.subr.bf16.mxu0 0
      %878 = vmatpush1.bf16.xpose.msra.mxu0 0
      %879 = vmatprep.subr.bf16.mxu0 0
      %880 = vmatpush1.bf16.xpose.msra.mxu0 0
      %881 = vmatprep.mubr.bf16.mxu0 0
      %882 = vmatmul.mubr.bf16.gmra.mrb[0].mxu0 %v844
      %v883 = vpop.f32.mrb[0].mxu0
      %v884 = vadd.f32 %v790, %v883
      %v885 = vpop.f32.mrb[0].mxu0
      %v886 = vpop.f32.mrb[0].mxu0
      %v887 = vadd.f32 %v791, %v886
      %v888 = vpop.f32.mrb[0].mxu0
      %889 = vdwg.mxu0
      %v891 = vsel %vm656, %v770, 0
      %v894 = vsel %vm656, %v778, 0
      %896 = vmatprep.subr.bf16.mxu0 0
      %897 = vmatpush1.bf16.xpose.msra.mxu0 %v894
      %898 = vmatprep.subr.bf16.mxu0 0
      %899 = vmatpush1.bf16.xpose.msra.mxu0 0
      %900 = vmatprep.subr.bf16.mxu0 0
      %901 = vmatpush1.bf16.xpose.msra.mxu0 0
      %902 = vmatprep.subr.bf16.mxu0 0
      %903 = vmatpush1.bf16.xpose.msra.mxu0 0
      %904 = vmatprep.subr.bf16.mxu0 0
      %905 = vmatpush1.bf16.xpose.msra.mxu0 0
      %906 = vmatprep.subr.bf16.mxu0 0
      %907 = vmatpush1.bf16.xpose.msra.mxu0 0
      %908 = vmatprep.subr.bf16.mxu0 0
      %909 = vmatpush1.bf16.xpose.msra.mxu0 0
      %910 = vmatprep.subr.bf16.mxu0 0
      %911 = vmatpush1.bf16.xpose.msra.mxu0 0
      %912 = vmatprep.subr.bf16.mxu0 0
      %913 = vmatpush1.bf16.xpose.msra.mxu0 0
      %914 = vmatprep.subr.bf16.mxu0 0
      %915 = vmatpush1.bf16.xpose.msra.mxu0 0
      %916 = vmatprep.subr.bf16.mxu0 0
      %917 = vmatpush1.bf16.xpose.msra.mxu0 0
      %918 = vmatprep.subr.bf16.mxu0 0
      %919 = vmatpush1.bf16.xpose.msra.mxu0 0
      %920 = vmatprep.subr.bf16.mxu0 0
      %921 = vmatpush1.bf16.xpose.msra.mxu0 0
      %922 = vmatprep.subr.bf16.mxu0 0
      %923 = vmatpush1.bf16.xpose.msra.mxu0 0
      %924 = vmatprep.subr.bf16.mxu0 0
      %925 = vmatpush1.bf16.xpose.msra.mxu0 0
      %926 = vmatprep.subr.bf16.mxu0 0
      %927 = vmatpush1.bf16.xpose.msra.mxu0 0
      %928 = vmatprep.mubr.bf16.mxu0 0
      %929 = vmatmul.mubr.bf16.gmra.mrb[0].mxu0 %v891
      %v930 = vpop.f32.mrb[0].mxu0
      %v931 = vadd.f32 %v792, %v930
      %v932 = vpop.f32.mrb[0].mxu0
      %v933 = vpop.f32.mrb[0].mxu0
      %v934 = vadd.f32 %v793, %v933
      %v935 = vpop.f32.mrb[0].mxu0
      %936 = vdwg.mxu0
      %v938 = vsel %vm656, %v771, 0
      %v941 = vsel %vm656, %v779, 0
      %943 = vmatprep.subr.bf16.mxu0 0
      %944 = vmatpush1.bf16.xpose.msra.mxu0 %v941
      %945 = vmatprep.subr.bf16.mxu0 0
      %946 = vmatpush1.bf16.xpose.msra.mxu0 0
      %947 = vmatprep.subr.bf16.mxu0 0
      %948 = vmatpush1.bf16.xpose.msra.mxu0 0
      %949 = vmatprep.subr.bf16.mxu0 0
      %950 = vmatpush1.bf16.xpose.msra.mxu0 0
      %951 = vmatprep.subr.bf16.mxu0 0
      %952 = vmatpush1.bf16.xpose.msra.mxu0 0
      %953 = vmatprep.subr.bf16.mxu0 0
      %954 = vmatpush1.bf16.xpose.msra.mxu0 0
      %955 = vmatprep.subr.bf16.mxu0 0
      %956 = vmatpush1.bf16.xpose.msra.mxu0 0
      %957 = vmatprep.subr.bf16.mxu0 0
      %958 = vmatpush1.bf16.xpose.msra.mxu0 0
      %959 = vmatprep.subr.bf16.mxu0 0
      %960 = vmatpush1.bf16.xpose.msra.mxu0 0
      %961 = vmatprep.subr.bf16.mxu0 0
      %962 = vmatpush1.bf16.xpose.msra.mxu0 0
      %963 = vmatprep.subr.bf16.mxu0 0
      %964 = vmatpush1.bf16.xpose.msra.mxu0 0
      %965 = vmatprep.subr.bf16.mxu0 0
      %966 = vmatpush1.bf16.xpose.msra.mxu0 0
      %967 = vmatprep.subr.bf16.mxu0 0
      %968 = vmatpush1.bf16.xpose.msra.mxu0 0
      %969 = vmatprep.subr.bf16.mxu0 0
      %970 = vmatpush1.bf16.xpose.msra.mxu0 0
      %971 = vmatprep.subr.bf16.mxu0 0
      %972 = vmatpush1.bf16.xpose.msra.mxu0 0
      %973 = vmatprep.subr.bf16.mxu0 0
      %974 = vmatpush1.bf16.xpose.msra.mxu0 0
      %975 = vmatprep.mubr.bf16.mxu0 0
      %976 = vmatmul.mubr.bf16.gmra.mrb[0].mxu0 %v938
      %v977 = vpop.f32.mrb[0].mxu0
      %v978 = vadd.f32 %v794, %v977
      %v979 = vpop.f32.mrb[0].mxu0
      %v980 = vpop.f32.mrb[0].mxu0
      %v981 = vadd.f32 %v795, %v980
      %v982 = vpop.f32.mrb[0].mxu0
      %983 = vdwg.mxu0
      %v984 = vsel %vm656, %v837, -inf
      %985 = vmax.xlane.f32.xlu0 %v984
      %v986 = vpop.xlane.xlu0 %985
      %v987 = vsel %vm656, %v840, -inf
      %988 = vmax.xlane.f32.xlu0 %v987
      %v989 = vpop.xlane.xlu0 %988
      %v990 = vsel %vm656, %v884, -inf
      %991 = vmax.xlane.f32.xlu0 %v990
      %v992 = vpop.xlane.xlu0 %991
      %v993 = vsel %vm656, %v887, -inf
      %994 = vmax.xlane.f32.xlu0 %v993
      %v995 = vpop.xlane.xlu0 %994
      %v996 = vsel %vm656, %v931, -inf
      %997 = vmax.xlane.f32.xlu0 %v996
      %v998 = vpop.xlane.xlu0 %997
      %v999 = vsel %vm656, %v934, -inf
      %1000 = vmax.xlane.f32.xlu0 %v999
      %v1001 = vpop.xlane.xlu0 %1000
      %v1002 = vsel %vm656, %v978, -inf
      %1003 = vmax.xlane.f32.xlu0 %v1002
      %v1004 = vpop.xlane.xlu0 %1003
      %v1005 = vsel %vm656, %v981, -inf
      %1006 = vmax.xlane.f32.xlu0 %v1005
      %v1007 = vpop.xlane.xlu0 %1006
      %v1008 = vsub.f32 %v837, %v986
      %v1009 = vsub.f32 %v840, %v989
      %v1010 = vsub.f32 %v884, %v992
      %v1011 = vsub.f32 %v887, %v995
      %v1012 = vsub.f32 %v931, %v998
      %v1013 = vsub.f32 %v934, %v1001
      %v1014 = vsub.f32 %v978, %v1004
      %v1015 = vsub.f32 %v981, %v1007
      %v1016 = vmul.f32 %v1008, 1.442695
      %v1017 = vpow.pop %v1016
      %v1018 = vmul.f32 %v1009, 1.442695
      %v1019 = vpow.pop %v1018
      %v1020 = vmul.f32 %v1010, 1.442695
      %v1021 = vpow.pop %v1020
      %v1022 = vmul.f32 %v1011, 1.442695
      %v1023 = vpow.pop %v1022
      %v1024 = vmul.f32 %v1012, 1.442695
      %v1025 = vpow.pop %v1024
      %v1026 = vmul.f32 %v1013, 1.442695
      %v1027 = vpow.pop %v1026
      %v1028 = vmul.f32 %v1014, 1.442695
      %v1029 = vpow.pop %v1028
      %v1030 = vmul.f32 %v1015, 1.442695
      %v1031 = vpow.pop %v1030
      %v1032 = vsel %vm656, %v1017, 0.0
      %1033 = vadd.xlane.f32.xlu0 %v1032
      %v1034 = vpop.xlane.xlu0 %1033
      %v1035 = vsel %vm656, %v1019, 0.0
      %1036 = vadd.xlane.f32.xlu0 %v1035
      %v1037 = vpop.xlane.xlu0 %1036
      %v1038 = vsel %vm656, %v1021, 0.0
      %1039 = vadd.xlane.f32.xlu0 %v1038
      %v1040 = vpop.xlane.xlu0 %1039
      %v1041 = vsel %vm656, %v1023, 0.0
      %1042 = vadd.xlane.f32.xlu0 %v1041
      %v1043 = vpop.xlane.xlu0 %1042
      %v1044 = vsel %vm656, %v1025, 0.0
      %1045 = vadd.xlane.f32.xlu0 %v1044
      %v1046 = vpop.xlane.xlu0 %1045
      %v1047 = vsel %vm656, %v1027, 0.0
      %1048 = vadd.xlane.f32.xlu0 %v1047
      %v1049 = vpop.xlane.xlu0 %1048
      %v1050 = vsel %vm656, %v1029, 0.0
      %1051 = vadd.xlane.f32.xlu0 %v1050
      %v1052 = vpop.xlane.xlu0 %1051
      %v1053 = vsel %vm656, %v1031, 0.0
      %1054 = vadd.xlane.f32.xlu0 %v1053
      %v1055 = vpop.xlane.xlu0 %1054
      %v1056 = vrcp.pop %v1034
      %v1057 = vrcp.pop %v1037
      %v1058 = vrcp.pop %v1040
      %v1059 = vrcp.pop %v1043
      %v1060 = vrcp.pop %v1046
      %v1061 = vrcp.pop %v1049
      %v1062 = vrcp.pop %v1052
      %v1063 = vrcp.pop %v1055
      %v1064 = vmul.f32 %v1017, %v1056
      %v1065 = vmul.f32 %v1019, %v1057
      %v1066 = vmul.f32 %v1021, %v1058
      %v1067 = vmul.f32 %v1023, %v1059
      %v1068 = vmul.f32 %v1025, %v1060
      %v1069 = vmul.f32 %v1027, %v1061
      %v1070 = vmul.f32 %v1029, %v1062
      %v1071 = vmul.f32 %v1031, %v1063
      %v1072 = vpack.c.bf16 %v1065, %v1064
      %v1073 = vpack.c.bf16 %v1067, %v1066
      %v1074 = vpack.c.bf16 %v1069, %v1068
      %v1075 = vpack.c.bf16 %v1071, %v1070
      %v1077 = vsel %vm656, %v1072, 0
      %vm1079 = vcmask 1043456
      %v1081 = vsel %vm1079, %v784, 0
      %1083 = vmatprep.subr.bf16.mxu0 0
      %1084 = vmatpush1.bf16.msra.mxu0 %v1081
      %1085 = vmatprep.subr.bf16.mxu0 0
      %1086 = vmatpush1.bf16.msra.mxu0 0
      %1087 = vmatprep.subr.bf16.mxu0 0
      %1088 = vmatpush1.bf16.msra.mxu0 0
      %1089 = vmatprep.subr.bf16.mxu0 0
      %1090 = vmatpush1.bf16.msra.mxu0 0
      %1091 = vmatprep.subr.bf16.mxu0 0
      %1092 = vmatpush1.bf16.msra.mxu0 0
      %1093 = vmatprep.subr.bf16.mxu0 0
      %1094 = vmatpush1.bf16.msra.mxu0 0
      %1095 = vmatprep.subr.bf16.mxu0 0
      %1096 = vmatpush1.bf16.msra.mxu0 0
      %1097 = vmatprep.subr.bf16.mxu0 0
      %1098 = vmatpush1.bf16.msra.mxu0 0
      %1099 = vmatprep.subr.bf16.mxu0 0
      %1100 = vmatpush1.bf16.msra.mxu0 0
      %1101 = vmatprep.subr.bf16.mxu0 0
      %1102 = vmatpush1.bf16.msra.mxu0 0
      %1103 = vmatprep.subr.bf16.mxu0 0
      %1104 = vmatpush1.bf16.msra.mxu0 0
      %1105 = vmatprep.subr.bf16.mxu0 0
      %1106 = vmatpush1.bf16.msra.mxu0 0
      %1107 = vmatprep.subr.bf16.mxu0 0
      %1108 = vmatpush1.bf16.msra.mxu0 0
      %1109 = vmatprep.subr.bf16.mxu0 0
      %1110 = vmatpush1.bf16.msra.mxu0 0
      %1111 = vmatprep.subr.bf16.mxu0 0
      %1112 = vmatpush1.bf16.msra.mxu0 0
      %1113 = vmatprep.subr.bf16.mxu0 0
      %1114 = vmatpush1.bf16.msra.mxu0 0
      %1115 = vmatprep.mubr.bf16.mxu0 0
      %1116 = vmatmul.mubr.bf16.gmra.mrb[0].mxu0 %v1077
      %v1117 = vpop.f32.mrb[0].mxu0
      %v1118 = vadd.f32 0.0, %v1117
      %v1119 = vpop.f32.mrb[0].mxu0
      %v1120 = vpop.f32.mrb[0].mxu0
      %v1121 = vadd.f32 0.0, %v1120
      %v1122 = vpop.f32.mrb[0].mxu0
      %1123 = vdwg.mxu0
      %v1125 = vsel %vm656, %v1073, 0
      %v1128 = vsel %vm1079, %v785, 0
      %1130 = vmatprep.subr.bf16.mxu0 0
      %1131 = vmatpush1.bf16.msra.mxu0 %v1128
      %1132 = vmatprep.subr.bf16.mxu0 0
      %1133 = vmatpush1.bf16.msra.mxu0 0
      %1134 = vmatprep.subr.bf16.mxu0 0
      %1135 = vmatpush1.bf16.msra.mxu0 0
      %1136 = vmatprep.subr.bf16.mxu0 0
      %1137 = vmatpush1.bf16.msra.mxu0 0
      %1138 = vmatprep.subr.bf16.mxu0 0
      %1139 = vmatpush1.bf16.msra.mxu0 0
      %1140 = vmatprep.subr.bf16.mxu0 0
      %1141 = vmatpush1.bf16.msra.mxu0 0
      %1142 = vmatprep.subr.bf16.mxu0 0
      %1143 = vmatpush1.bf16.msra.mxu0 0
      %1144 = vmatprep.subr.bf16.mxu0 0
      %1145 = vmatpush1.bf16.msra.mxu0 0
      %1146 = vmatprep.subr.bf16.mxu0 0
      %1147 = vmatpush1.bf16.msra.mxu0 0
      %1148 = vmatprep.subr.bf16.mxu0 0
      %1149 = vmatpush1.bf16.msra.mxu0 0
      %1150 = vmatprep.subr.bf16.mxu0 0
      %1151 = vmatpush1.bf16.msra.mxu0 0
      %1152 = vmatprep.subr.bf16.mxu0 0
      %1153 = vmatpush1.bf16.msra.mxu0 0
      %1154 = vmatprep.subr.bf16.mxu0 0
      %1155 = vmatpush1.bf16.msra.mxu0 0
      %1156 = vmatprep.subr.bf16.mxu0 0
      %1157 = vmatpush1.bf16.msra.mxu0 0
      %1158 = vmatprep.subr.bf16.mxu0 0
      %1159 = vmatpush1.bf16.msra.mxu0 0
      %1160 = vmatprep.subr.bf16.mxu0 0
      %1161 = vmatpush1.bf16.msra.mxu0 0
      %1162 = vmatprep.mubr.bf16.mxu0 0
      %1163 = vmatmul.mubr.bf16.gmra.mrb[0].mxu0 %v1125
      %v1164 = vpop.f32.mrb[0].mxu0
      %v1165 = vadd.f32 0.0, %v1164
      %v1166 = vpop.f32.mrb[0].mxu0
      %v1167 = vpop.f32.mrb[0].mxu0
      %v1168 = vadd.f32 0.0, %v1167
      %v1169 = vpop.f32.mrb[0].mxu0
      %1170 = vdwg.mxu0
      %v1172 = vsel %vm656, %v1074, 0
      %v1175 = vsel %vm1079, %v786, 0
      %1177 = vmatprep.subr.bf16.mxu0 0
      %1178 = vmatpush1.bf16.msra.mxu0 %v1175
      %1179 = vmatprep.subr.bf16.mxu0 0
      %1180 = vmatpush1.bf16.msra.mxu0 0
      %1181 = vmatprep.subr.bf16.mxu0 0
      %1182 = vmatpush1.bf16.msra.mxu0 0
      %1183 = vmatprep.subr.bf16.mxu0 0
      %1184 = vmatpush1.bf16.msra.mxu0 0
      %1185 = vmatprep.subr.bf16.mxu0 0
      %1186 = vmatpush1.bf16.msra.mxu0 0
      %1187 = vmatprep.subr.bf16.mxu0 0
      %1188 = vmatpush1.bf16.msra.mxu0 0
      %1189 = vmatprep.subr.bf16.mxu0 0
      %1190 = vmatpush1.bf16.msra.mxu0 0
      %1191 = vmatprep.subr.bf16.mxu0 0
      %1192 = vmatpush1.bf16.msra.mxu0 0
      %1193 = vmatprep.subr.bf16.mxu0 0
      %1194 = vmatpush1.bf16.msra.mxu0 0
      %1195 = vmatprep.subr.bf16.mxu0 0
      %1196 = vmatpush1.bf16.msra.mxu0 0
      %1197 = vmatprep.subr.bf16.mxu0 0
      %1198 = vmatpush1.bf16.msra.mxu0 0
      %1199 = vmatprep.subr.bf16.mxu0 0
      %1200 = vmatpush1.bf16.msra.mxu0 0
      %1201 = vmatprep.subr.bf16.mxu0 0
      %1202 = vmatpush1.bf16.msra.mxu0 0
      %1203 = vmatprep.subr.bf16.mxu0 0
      %1204 = vmatpush1.bf16.msra.mxu0 0
      %1205 = vmatprep.subr.bf16.mxu0 0
      %1206 = vmatpush1.bf16.msra.mxu0 0
      %1207 = vmatprep.subr.bf16.mxu0 0
      %1208 = vmatpush1.bf16.msra.mxu0 0
      %1209 = vmatprep.mubr.bf16.mxu0 0
      %1210 = vmatmul.mubr.bf16.gmra.mrb[0].mxu0 %v1172
      %v1211 = vpop.f32.mrb[0].mxu0
      %v1212 = vadd.f32 0.0, %v1211
      %v1213 = vpop.f32.mrb[0].mxu0
      %v1214 = vpop.f32.mrb[0].mxu0
      %v1215 = vadd.f32 0.0, %v1214
      %v1216 = vpop.f32.mrb[0].mxu0
      %1217 = vdwg.mxu0
      %v1219 = vsel %vm656, %v1075, 0
      %v1222 = vsel %vm1079, %v787, 0
      %1224 = vmatprep.subr.bf16.mxu0 0
      %1225 = vmatpush1.bf16.msra.mxu0 %v1222
      %1226 = vmatprep.subr.bf16.mxu0 0
      %1227 = vmatpush1.bf16.msra.mxu0 0
      %1228 = vmatprep.subr.bf16.mxu0 0
      %1229 = vmatpush1.bf16.msra.mxu0 0
      %1230 = vmatprep.subr.bf16.mxu0 0
      %1231 = vmatpush1.bf16.msra.mxu0 0
      %1232 = vmatprep.subr.bf16.mxu0 0
      %1233 = vmatpush1.bf16.msra.mxu0 0
      %1234 = vmatprep.subr.bf16.mxu0 0
      %1235 = vmatpush1.bf16.msra.mxu0 0
      %1236 = vmatprep.subr.bf16.mxu0 0
      %1237 = vmatpush1.bf16.msra.mxu0 0
      %1238 = vmatprep.subr.bf16.mxu0 0
      %1239 = vmatpush1.bf16.msra.mxu0 0
      %1240 = vmatprep.subr.bf16.mxu0 0
      %1241 = vmatpush1.bf16.msra.mxu0 0
      %1242 = vmatprep.subr.bf16.mxu0 0
      %1243 = vmatpush1.bf16.msra.mxu0 0
      %1244 = vmatprep.subr.bf16.mxu0 0
      %1245 = vmatpush1.bf16.msra.mxu0 0
      %1246 = vmatprep.subr.bf16.mxu0 0
      %1247 = vmatpush1.bf16.msra.mxu0 0
      %1248 = vmatprep.subr.bf16.mxu0 0
      %1249 = vmatpush1.bf16.msra.mxu0 0
      %1250 = vmatprep.subr.bf16.mxu0 0
      %1251 = vmatpush1.bf16.msra.mxu0 0
      %1252 = vmatprep.subr.bf16.mxu0 0
      %1253 = vmatpush1.bf16.msra.mxu0 0
      %1254 = vmatprep.subr.bf16.mxu0 0
      %1255 = vmatpush1.bf16.msra.mxu0 0
      %1256 = vmatprep.mubr.bf16.mxu0 0
      %1257 = vmatmul.mubr.bf16.gmra.mrb[0].mxu0 %v1219
      %v1258 = vpop.f32.mrb[0].mxu0
      %v1259 = vadd.f32 0.0, %v1258
      %v1260 = vpop.f32.mrb[0].mxu0
      %v1261 = vpop.f32.mrb[0].mxu0
      %v1262 = vadd.f32 0.0, %v1261
      %v1263 = vpop.f32.mrb[0].mxu0
      %1264 = vdwg.mxu0
      %1265 = vst.msk [vmem:[#allocation6] sm:$0xff] %vm656, %v1118
      %1267 = vrot.lane.b32.xlu0 %v1121, 8
      %v1268 = vpop.permute.xlu0 %1267
      %vm1270 = vcmask 130112
      %1271 = vst.msk [vmem:[#allocation6] sm:$0xff] %vm1270, %v1268
      %1273 = vrot.lane.b32.xlu0 %v1165, 16
      %v1274 = vpop.permute.xlu0 %1273
      %vm1276 = vcmask 195712
      %1277 = vst.msk [vmem:[#allocation6] sm:$0xff] %vm1276, %v1274
      %1279 = vrot.lane.b32.xlu0 %v1168, 24
      %v1280 = vpop.permute.xlu0 %1279
      %vm1282 = vcmask 261312
      %1283 = vst.msk [vmem:[#allocation6] sm:$0xff] %vm1282, %v1280
      %1284 = vst.msk [vmem:[#allocation6 + $0x8] sm:$0xff] %vm656, %v1212
      %1286 = vrot.lane.b32.xlu0 %v1215, 8
      %v1287 = vpop.permute.xlu0 %1286
      %1289 = vst.msk [vmem:[#allocation6 + $0x8] sm:$0xff] %vm1270, %v1287
      %1291 = vrot.lane.b32.xlu0 %v1259, 16
      %v1292 = vpop.permute.xlu0 %1291
      %1294 = vst.msk [vmem:[#allocation6 + $0x8] sm:$0xff] %vm1276, %v1292
      %1296 = vrot.lane.b32.xlu0 %v1262, 24
      %v1297 = vpop.permute.xlu0 %1296
      %1299 = vst.msk [vmem:[#allocation6 + $0x8] sm:$0xff] %vm1282, %v1297
      %v1300 = vld [vmem:[#allocation6] sm:$0xff]
      %v1301 = vld [vmem:[#allocation6 + $0x8] sm:$0xff]
      %v1302 = vpack.c.bf16 %v1301, %v1300
      %v1303 = vld [vmem:[%s511] sm:$0xf]
      %v1304 = vld [vmem:[%s511 + $0x4] sm:$0xf]
      %v1305 = vld [vmem:[%s511 + $0x8] sm:$0xf]
      %v1306 = vld [vmem:[%s511 + $0xc] sm:$0xf]
      %v1311 = vunpack.c.l.b16 %v1303
      %v1312 = vunpack.c.l.b16 %v1304
      %v1313 = vunpack.c.l.b16 %v1305
      %v1314 = vunpack.c.l.b16 %v1306
      %v1315 = vpack.c.b16 %v1312, %v1311
      %v1316 = vpack.c.b16 %v1314, %v1313
      %v1320 = vsel %vm543, %v1302, 0
      %1322 = vmatprep.subr.bf16.mxu0 0
      %1323 = vmatpush1.bf16.msra.mxu0 %v1315
      %1324 = vmatprep.subr.bf16.mxu0 0
      %1325 = vmatpush1.bf16.msra.mxu0 %v1316
      %1326 = vmatprep.subr.bf16.mxu0 0
      %1327 = vmatpush1.bf16.msra.mxu0 0
      %1328 = vmatprep.subr.bf16.mxu0 0
      %1329 = vmatpush1.bf16.msra.mxu0 0
      %1330 = vmatprep.subr.bf16.mxu0 0
      %1331 = vmatpush1.bf16.msra.mxu0 0
      %1332 = vmatprep.subr.bf16.mxu0 0
      %1333 = vmatpush1.bf16.msra.mxu0 0
      %1334 = vmatprep.subr.bf16.mxu0 0
      %1335 = vmatpush1.bf16.msra.mxu0 0
      %1336 = vmatprep.subr.bf16.mxu0 0
      %1337 = vmatpush1.bf16.msra.mxu0 0
      %1338 = vmatprep.subr.bf16.mxu0 0
      %1339 = vmatpush1.bf16.msra.mxu0 0
      %1340 = vmatprep.subr.bf16.mxu0 0
      %1341 = vmatpush1.bf16.msra.mxu0 0
      %1342 = vmatprep.subr.bf16.mxu0 0
      %1343 = vmatpush1.bf16.msra.mxu0 0
      %1344 = vmatprep.subr.bf16.mxu0 0
      %1345 = vmatpush1.bf16.msra.mxu0 0
      %1346 = vmatprep.subr.bf16.mxu0 0
      %1347 = vmatpush1.bf16.msra.mxu0 0
      %1348 = vmatprep.subr.bf16.mxu0 0
      %1349 = vmatpush1.bf16.msra.mxu0 0
      %1350 = vmatprep.subr.bf16.mxu0 0
      %1351 = vmatpush1.bf16.msra.mxu0 0
      %1352 = vmatprep.subr.bf16.mxu0 0
      %1353 = vmatpush1.bf16.msra.mxu0 0
      %1354 = vmatprep.mubr.bf16.mxu0 0
      %1355 = vmatmul.mubr.bf16.gmra.mrb[0].mxu0 %v1320
      %v1356 = vpop.f32.mrb[0].mxu0
      %v1357 = vadd.f32 0.0, %v1356
      %v1358 = vpop.f32.mrb[0].mxu0
      %v1359 = vpop.f32.mrb[0].mxu0
      %v1360 = vadd.f32 0.0, %v1359
      %v1361 = vpop.f32.mrb[0].mxu0
      %1362 = vdwg.mxu0
      %v1363 = vadd.f32 %v538, %v1357
      %v1364 = vadd.f32 %v539, %v1360
      %v1365 = vld [vmem:[%s517] sm:$0x1]
      %v1366 = vmul.f32 %v1363, %v1363
      %v1367 = vmul.f32 %v1364, %v1364
      %v1368 = vsel %vm543, %v1366, 0.0
      %1369 = vadd.xlane.f32.xlu0 %v1368
      %v1370 = vpop.xlane.xlu0 %1369
      %v1371 = vsel %vm543, %v1367, 0.0
      %1372 = vadd.xlane.f32.xlu0 %v1371
      %v1373 = vpop.xlane.xlu0 %1372
      %v1374 = vmul.f32 %v1370, %v550
      %v1375 = vmul.f32 %v1373, %v550
      %v1376 = vadd.f32 %v1374, 1e-06
      %v1377 = vadd.f32 %v1375, 1e-06
      %v1378 = vrsqrt.pop %v1376
      %v1379 = vrsqrt.pop %v1377
      %v1380 = vmul.f32 %v1363, %v1378
      %v1381 = vmul.f32 %v1364, %v1379
      %v1383 = vlaneseq
      %v1384 = vshrl.u32 %v1383, 7
      %v1385 = vsub.s32 0, %v1384
      %v1386 = vrot.slane %v1365, %v1385
      %v1388 = vmul.f32 %v1380, %v1386
      %v1389 = vmul.f32 %v1381, %v1386
      %v1390 = vpack.c.bf16 %v1389, %v1388
      %v1391 = vld [vmem:[%s522] sm:$0xf]
      %v1392 = vld [vmem:[%s522 + $0x4] sm:$0xf]
      %v1393 = vld [vmem:[%s522 + $0x8] sm:$0xf]
      %v1394 = vld [vmem:[%s522 + $0xc] sm:$0xf]
      %v1399 = vunpack.c.l.b16 %v1391
      %v1400 = vunpack.c.l.b16 %v1392
      %v1401 = vunpack.c.l.b16 %v1393
      %v1402 = vunpack.c.l.b16 %v1394
      %v1403 = vpack.c.b16 %v1400, %v1399
      %v1404 = vpack.c.b16 %v1402, %v1401
      %v1408 = vsel %vm543, %v1390, 0
      %1410 = vmatprep.subr.bf16.mxu0 0
      %1411 = vmatpush1.bf16.msra.mxu0 %v1403
      %1412 = vmatprep.subr.bf16.mxu0 0
      %1413 = vmatpush1.bf16.msra.mxu0 %v1404
      %1414 = vmatprep.subr.bf16.mxu0 0
      %1415 = vmatpush1.bf16.msra.mxu0 0
      %1416 = vmatprep.subr.bf16.mxu0 0
      %1417 = vmatpush1.bf16.msra.mxu0 0
      %1418 = vmatprep.subr.bf16.mxu0 0
      %1419 = vmatpush1.bf16.msra.mxu0 0
      %1420 = vmatprep.subr.bf16.mxu0 0
      %1421 = vmatpush1.bf16.msra.mxu0 0
      %1422 = vmatprep.subr.bf16.mxu0 0
      %1423 = vmatpush1.bf16.msra.mxu0 0
      %1424 = vmatprep.subr.bf16.mxu0 0
      %1425 = vmatpush1.bf16.msra.mxu0 0
      %1426 = vmatprep.subr.bf16.mxu0 0
      %1427 = vmatpush1.bf16.msra.mxu0 0
      %1428 = vmatprep.subr.bf16.mxu0 0
      %1429 = vmatpush1.bf16.msra.mxu0 0
      %1430 = vmatprep.subr.bf16.mxu0 0
      %1431 = vmatpush1.bf16.msra.mxu0 0
      %1432 = vmatprep.subr.bf16.mxu0 0
      %1433 = vmatpush1.bf16.msra.mxu0 0
      %1434 = vmatprep.subr.bf16.mxu0 0
      %1435 = vmatpush1.bf16.msra.mxu0 0
      %1436 = vmatprep.subr.bf16.mxu0 0
      %1437 = vmatpush1.bf16.msra.mxu0 0
      %1438 = vmatprep.subr.bf16.mxu0 0
      %1439 = vmatpush1.bf16.msra.mxu0 0
      %1440 = vmatprep.subr.bf16.mxu0 0
      %1441 = vmatpush1.bf16.msra.mxu0 0
      %1442 = vmatprep.mubr.bf16.mxu0 0
      %1443 = vmatmul.mubr.bf16.gmra.mrb[0].mxu0 %v1408
      %v1444 = vpop.f32.mrb[0].mxu0
      %v1445 = vadd.f32 0.0, %v1444
      %v1446 = vpop.f32.mrb[0].mxu0
      %v1447 = vpop.f32.mrb[0].mxu0
      %v1448 = vadd.f32 0.0, %v1447
      %v1449 = vpop.f32.mrb[0].mxu0
      %1450 = vdwg.mxu0
      %v1451 = vxor.u32 %v1445, 2147483648
      %v1452 = vxor.u32 %v1448, 2147483648
      %v1453 = vmul.f32 %v1451, 1.442695
      %v1454 = vpow.pop %v1453
      %v1455 = vmul.f32 %v1452, 1.442695
      %v1456 = vpow.pop %v1455
      %v1457 = vadd.f32 %v1454, 1.0
      %v1458 = vadd.f32 %v1456, 1.0
      %v1459 = vrcp.pop %v1457
      %v1460 = vmul.f32 1.0, %v1459
      %v1461 = vrcp.pop %v1458
      %v1462 = vmul.f32 1.0, %v1461
      %v1463 = vmul.f32 %v1445, %v1460
      %v1464 = vmul.f32 %v1448, %v1462
      %1467 = vrot.lane.b32.xlu0 %v1445, 64
      %v1468 = vpop.permute.xlu0 %1467
      %1469 = vrot.lane.b32.xlu0 %v1448, 64
      %v1470 = vpop.permute.xlu0 %1469
      %v1473 = vmul.f32 %v1463, %v1468
      %v1474 = vmul.f32 %v1464, %v1470
      %v1475 = vpack.c.bf16 %v1474, %v1473
      %v1476 = vld [vmem:[%s527] sm:$0xf]
      %v1477 = vld [vmem:[%s527 + $0x4] sm:$0xf]
      %v1478 = vld [vmem:[%s527 + $0x8] sm:$0xf]
      %v1479 = vld [vmem:[%s527 + $0xc] sm:$0xf]
      %v1480 = vld [vmem:[%s527 + $0x10] sm:$0xf]
      %v1481 = vld [vmem:[%s527 + $0x14] sm:$0xf]
      %v1482 = vld [vmem:[%s527 + $0x18] sm:$0xf]
      %v1483 = vld [vmem:[%s527 + $0x1c] sm:$0xf]
      %v1492 = vunpack.c.l.b16 %v1476
      %v1493 = vunpack.c.l.b16 %v1477
      %v1494 = vunpack.c.l.b16 %v1478
      %v1495 = vunpack.c.l.b16 %v1479
      %v1496 = vunpack.c.l.b16 %v1480
      %v1497 = vunpack.c.l.b16 %v1481
      %v1498 = vunpack.c.l.b16 %v1482
      %v1499 = vunpack.c.l.b16 %v1483
      %v1500 = vpack.c.b16 %v1493, %v1492
      %v1501 = vpack.c.b16 %v1495, %v1494
      %v1502 = vpack.c.b16 %v1497, %v1496
      %v1503 = vpack.c.b16 %v1499, %v1498
      %vm1508 = vcmask 523264
      %v1510 = vsel %vm1508, %v1475, 0
      %1512 = vmatprep.subr.bf16.mxu0 0
      %1513 = vmatpush1.bf16.msra.mxu0 %v1500
      %1514 = vmatprep.subr.bf16.mxu0 0
      %1515 = vmatpush1.bf16.msra.mxu0 %v1501
      %1516 = vmatprep.subr.bf16.mxu0 0
      %1517 = vmatpush1.bf16.msra.mxu0 %v1502
      %1518 = vmatprep.subr.bf16.mxu0 0
      %1519 = vmatpush1.bf16.msra.mxu0 %v1503
      %1520 = vmatprep.subr.bf16.mxu0 0
      %1521 = vmatpush1.bf16.msra.mxu0 0
      %1522 = vmatprep.subr.bf16.mxu0 0
      %1523 = vmatpush1.bf16.msra.mxu0 0
      %1524 = vmatprep.subr.bf16.mxu0 0
      %1525 = vmatpush1.bf16.msra.mxu0 0
      %1526 = vmatprep.subr.bf16.mxu0 0
      %1527 = vmatpush1.bf16.msra.mxu0 0
      %1528 = vmatprep.subr.bf16.mxu0 0
      %1529 = vmatpush1.bf16.msra.mxu0 0
      %1530 = vmatprep.subr.bf16.mxu0 0
      %1531 = vmatpush1.bf16.msra.mxu0 0
      %1532 = vmatprep.subr.bf16.mxu0 0
      %1533 = vmatpush1.bf16.msra.mxu0 0
      %1534 = vmatprep.subr.bf16.mxu0 0
      %1535 = vmatpush1.bf16.msra.mxu0 0
      %1536 = vmatprep.subr.bf16.mxu0 0
      %1537 = vmatpush1.bf16.msra.mxu0 0
      %1538 = vmatprep.subr.bf16.mxu0 0
      %1539 = vmatpush1.bf16.msra.mxu0 0
      %1540 = vmatprep.subr.bf16.mxu0 0
      %1541 = vmatpush1.bf16.msra.mxu0 0
      %1542 = vmatprep.subr.bf16.mxu0 0
      %1543 = vmatpush1.bf16.msra.mxu0 0
      %1544 = vmatprep.mubr.bf16.mxu0 0
      %1545 = vmatmul.mubr.bf16.gmra.mrb[0].mxu0 %v1510
      %v1546 = vpop.f32.mrb[0].mxu0
      %v1547 = vadd.f32 0.0, %v1546
      %v1548 = vpop.f32.mrb[0].mxu0
      %v1549 = vpop.f32.mrb[0].mxu0
      %v1550 = vadd.f32 0.0, %v1549
      %v1551 = vpop.f32.mrb[0].mxu0
      %1552 = vdwg.mxu0
      %v1553 = vadd.f32 %v1363, %v1547
      %v1554 = vadd.f32 %v1364, %v1550
      %1555 = vst.msk [vmem:[#allocation2] sm:$0xff] %vm543, %v1553
      %1556 = vst.msk [vmem:[#allocation2 + $0x8] sm:$0xff] %vm543, %v1554
      %p1557 = scmp.eq.s32.totalorder %s24, 1
      // Predicated region
      $region77: #{last_stage_forward.1} parent=71 // pred_check
        %p1558 = pneg %p1557
      $region78: #{last_stage_forward.1} parent=71 // pred_check_branch
        %1560 = sbr.rel (%p1558) target = $region80
      $region79: #{last_stage_forward.1} parent=71 // pred_region
        %v1561 = vld [vmem:[%s11] sm:$0x1]
        %v1562 = vmul.f32 %v1553, %v1553
        %v1563 = vmul.f32 %v1554, %v1554
        %v1564 = vsel %vm543, %v1562, 0.0
        %1565 = vadd.xlane.f32.xlu0 %v1564
        %v1566 = vpop.xlane.xlu0 %1565
        %v1567 = vsel %vm543, %v1563, 0.0
        %1568 = vadd.xlane.f32.xlu0 %v1567
        %v1569 = vpop.xlane.xlu0 %1568
        %v1570 = vmul.f32 %v1566, %v550
        %v1571 = vmul.f32 %v1569, %v550
        %v1572 = vadd.f32 %v1570, 1e-06
        %v1573 = vadd.f32 %v1571, 1e-06
        %v1574 = vrsqrt.pop %v1572
        %v1575 = vrsqrt.pop %v1573
        %v1576 = vmul.f32 %v1553, %v1574
        %v1577 = vmul.f32 %v1554, %v1575
        %v1579 = vlaneseq
        %v1580 = vshrl.u32 %v1579, 7
        %v1581 = vsub.s32 0, %v1580
        %v1582 = vrot.slane %v1561, %v1581
        %v1584 = vmul.f32 %v1576, %v1582
        %v1585 = vmul.f32 %v1577, %v1582
        %v1586 = vpack.c.bf16 %v1585, %v1584
        %v1587 = vld [vmem:[%s12] sm:$0xf]
        %v1588 = vld [vmem:[%s12 + $0x4] sm:$0xf]
        %v1589 = vld [vmem:[%s12 + $0x8] sm:$0xf]
        %v1590 = vld [vmem:[%s12 + $0xc] sm:$0xf]
        %v1595 = vunpack.c.l.b16 %v1587
        %v1596 = vunpack.c.l.b16 %v1588
        %v1597 = vunpack.c.l.b16 %v1589
        %v1598 = vunpack.c.l.b16 %v1590
        %v1599 = vpack.c.b16 %v1596, %v1595
        %v1600 = vpack.c.b16 %v1598, %v1597
        %v1604 = vsel %vm543, %v1586, 0
        %1606 = vmatprep.subr.bf16.mxu0 0
        %1607 = vmatpush1.bf16.msra.mxu0 %v1599
        %1608 = vmatprep.subr.bf16.mxu0 0
        %1609 = vmatpush1.bf16.msra.mxu0 %v1600
        %1610 = vmatprep.subr.bf16.mxu0 0
        %1611 = vmatpush1.bf16.msra.mxu0 0
        %1612 = vmatprep.subr.bf16.mxu0 0
        %1613 = vmatpush1.bf16.msra.mxu0 0
        %1614 = vmatprep.subr.bf16.mxu0 0
        %1615 = vmatpush1.bf16.msra.mxu0 0
        %1616 = vmatprep.subr.bf16.mxu0 0
        %1617 = vmatpush1.bf16.msra.mxu0 0
        %1618 = vmatprep.subr.bf16.mxu0 0
        %1619 = vmatpush1.bf16.msra.mxu0 0
        %1620 = vmatprep.subr.bf16.mxu0 0
        %1621 = vmatpush1.bf16.msra.mxu0 0
        %1622 = vmatprep.subr.bf16.mxu0 0
        %1623 = vmatpush1.bf16.msra.mxu0 0
        %1624 = vmatprep.subr.bf16.mxu0 0
        %1625 = vmatpush1.bf16.msra.mxu0 0
        %1626 = vmatprep.subr.bf16.mxu0 0
        %1627 = vmatpush1.bf16.msra.mxu0 0
        %1628 = vmatprep.subr.bf16.mxu0 0
        %1629 = vmatpush1.bf16.msra.mxu0 0
        %1630 = vmatprep.subr.bf16.mxu0 0
        %1631 = vmatpush1.bf16.msra.mxu0 0
        %1632 = vmatprep.subr.bf16.mxu0 0
        %1633 = vmatpush1.bf16.msra.mxu0 0
        %1634 = vmatprep.subr.bf16.mxu0 0
        %1635 = vmatpush1.bf16.msra.mxu0 0
        %1636 = vmatprep.subr.bf16.mxu0 0
        %1637 = vmatpush1.bf16.msra.mxu0 0
        %1638 = vmatprep.mubr.bf16.mxu0 0
        %1639 = vmatmul.mubr.bf16.gmra.mrb[0].mxu0 %v1604
        %v1640 = vpop.f32.mrb[0].mxu0
        %v1641 = vadd.f32 0.0, %v1640
        %v1642 = vpop.f32.mrb[0].mxu0
        %v1643 = vpop.f32.mrb[0].mxu0
        %v1644 = vadd.f32 0.0, %v1643
        %v1645 = vpop.f32.mrb[0].mxu0
        %1646 = vdwg.mxu0
        %v1647 = vpack.c.bf16 %v1644, %v1641
        %v1649 = vunpack.c.l.b16 %v1647
        %v1650 = vunpack.c.h.b16 %v1647
        %v1651 = vpack.c.b16 %v1649, %v1649
        %v1652 = vpack.c.b16 %v1650, %v1650
        %1655 = vst [vmem:[%s13] sm:$0xf] %v1651
        %1656 = vst [vmem:[%s13 + $0x4] sm:$0xf] %v1652
      $region80: #{last_stage_forward.1} parent=71 // pred_fallthru
        _
      // Predicated region
      $region81: #{last_stage_forward.1} parent=71 // pred_check
        %p1657 = pneg %p345
      $region82: #{last_stage_forward.1} parent=71 // pred_check_branch
        %1659 = sbr.rel (%p1657) target = $region84
      $region83: #{last_stage_forward.1} parent=71 // pred_region
        _
      $region84: #{last_stage_forward.1} parent=71 // pred_fallthru
        _
      // Predicated region
      $region85: #{last_stage_forward.1} parent=71 // pred_check
        %p1660 = pneg %p345
      $region86: #{last_stage_forward.1} parent=71 // pred_check_branch
        %1662 = sbr.rel (%p1660) target = $region88
      $region87: #{last_stage_forward.1} parent=71 // pred_region
        _
      $region88: #{last_stage_forward.1} parent=71 // pred_fallthru
        _
    $region72: #{last_stage_forward.1} parent=5 // pred_fallthru
      _
    %p1663 = scmp.le.s32.totalorder 2, %s19
    // Predicated region
    $region89: #{last_stage_forward.1} parent=5 // pred_check
      %p1664 = pneg %p1663
    $region90: #{last_stage_forward.1} parent=5 // pred_check_branch
      %1666 = sbr.rel (%p1664) target = $region92
    $region91: #{last_stage_forward.1} parent=5 // pred_region
      %s1667 = ssub.s32 %s19, 2
    $region92: #{last_stage_forward.1} parent=5 // pred_fallthru
      _
  $region6: #{last_stage_forward.1} parent=0 // loop_footer
    %s23 = sadd.s32 1, %s19
  $region7: #{last_stage_forward.1} parent=0 // loop_footer_branch
    %18 = sbr.rel target = $region3
  $region8: #{last_stage_forward.1} parent=0 // loop_exit
    _

</llo_original>
